<compile_context>
chip_gen: v6e
topology: v6e:2x2x1
jax: 0.10.0
libtpu: 0.0.40
codegen_flags: <defaults>
</compile_context>

<pallas_src>
import math

import jax
import jax.numpy as jnp
from jax.experimental import pallas as pl
from jax.experimental.pallas import tpu as pltpu

# ---- model hyper-params (small, consistent with the module) ----
B = 2            # batch
S = 8            # sequence length
E = 32           # embed_dim
H = 4            # num_heads
DH = E // H      # head dim
WF = 4           # widening_factor
HID = E * WF     # MLP hidden (128)
ROWS = B * S     # tokens folded into rows (16)
EPS = 1e-5       # nn.LayerNorm default eps
VEC_W = 128      # width of the packed vector slab (= max(3E, HID)), one vreg

# rows of the packed (8, VEC_W) vector slab
_LN1W, _LN1B, _BQKV, _BO, _LN2W, _LN2B, _B1, _B2 = range(8)


def _layernorm(x, w, b):
    mu = jnp.mean(x, axis=-1, keepdims=True)
    var = jnp.mean((x - mu) ** 2, axis=-1, keepdims=True)
    return (x - mu) * jax.lax.rsqrt(var + EPS) * w + b


def _gelu_exact(x):
    # PyTorch nn.functional.gelu default = exact erf-based GELU
    return 0.5 * x * (1.0 + jax.lax.erf(x * (1.0 / math.sqrt(2.0))))


def encoder_kernel(x_ref, w_in_ref, w_out_ref, vecs_ref, o_ref):
    # x_ref: (ROWS, E)      activations, batch folded into rows
    # w_in_ref: (E, HID+3E) [ W1 | Wqkv ]   (lane offsets 0 and 128)
    # w_out_ref: (HID+E, E) [ W2 ; Wo ]     (sublane offsets 0 and 128)
    # vecs_ref: (8, VEC_W)  all LN scales/shifts + biases, one row each
    x = x_ref[...].astype(jnp.float32)                               # (16, 32)
    vecs = vecs_ref[...].astype(jnp.float32)                         # (8, 128)

    ln1_w = vecs[_LN1W:_LN1W + 1, :E]
    ln1_b = vecs[_LN1B:_LN1B + 1, :E]
    bqkv = vecs[_BQKV:_BQKV + 1, :3 * E]
    bo = vecs[_BO:_BO + 1, :E]
    ln2_w = vecs[_LN2W:_LN2W + 1, :E]
    ln2_b = vecs[_LN2B:_LN2B + 1, :E]
    b1 = vecs[_B1:_B1 + 1, :HID]
    b2 = vecs[_B2:_B2 + 1, :E]

    # ---- LayerNorm 1 ----
    h = _layernorm(x, ln1_w, ln1_b)                                  # (16, 32)

    # ---- fused QKV projection: one wide (16,32)@(32,96) matmul ----
    wqkv = w_in_ref[:, HID:HID + 3 * E]                              # (32, 96)
    qkv = jnp.dot(h, wqkv, preferred_element_type=jnp.float32) + bqkv  # (16, 96)

    # ---- per-(batch, head) score tiles; softmax batched over one slab ----
    scale = 1.0 / math.sqrt(DH)
    scores, vals = [], []
    for b in range(B):                                               # static unroll
        rows = slice(b * S, (b + 1) * S)                             # sublane-aligned
        for hd in range(H):
            q = qkv[rows, hd * DH:(hd + 1) * DH]                     # (8, 8)
            k = qkv[rows, E + hd * DH:E + (hd + 1) * DH]             # (8, 8)
            v = qkv[rows, 2 * E + hd * DH:2 * E + (hd + 1) * DH]     # (8, 8)
            s = jax.lax.dot_general(
                q, k, (((1,), (1,)), ((), ())),
                preferred_element_type=jnp.float32) * scale          # (8, 8)
            scores.append(s)
            vals.append(v)
    # one (64, 8) slab -> a single max / exp / sum / reciprocal chain
    s_all = jnp.concatenate(scores, axis=0)                          # (B*H*S, S)
    s_all = s_all - jnp.max(s_all, axis=-1, keepdims=True)
    p_all = jnp.exp(s_all)
    p_all = p_all * pl.reciprocal(jnp.sum(p_all, axis=-1, keepdims=True),
                                  approx=True)

    # ---- context + output projection folded into the head loop ----
    wo = w_out_ref[HID:HID + E, :]                                   # (32, 32)
    blocks = []
    for b in range(B):
        acc = None
        for hd in range(H):
            idx = b * H + hd
            p = p_all[idx * S:(idx + 1) * S, :]                      # (8, 8)
            ctx = jnp.dot(p, vals[idx],
                          preferred_element_type=jnp.float32)        # (8, 8)
            term = jnp.dot(ctx, wo[hd * DH:(hd + 1) * DH, :],
                           preferred_element_type=jnp.float32)       # (8, 32)
            acc = term if acc is None else acc + term                # init w/ h==0 term
        blocks.append(acc)
    attn = jnp.concatenate(blocks, axis=0)                           # (16, 32)

    x1 = attn + bo + x                                               # out-proj bias + residual 1

    # ---- LayerNorm 2 + MLP (exact GELU) ----
    h2 = _layernorm(x1, ln2_w, ln2_b)
    m = jnp.dot(h2, w_in_ref[:, :HID], preferred_element_type=jnp.float32) + b1
    m = _gelu_exact(m)
    m = jnp.dot(m, w_out_ref[:HID, :], preferred_element_type=jnp.float32) + b2

    o_ref[...] = (m + x1).astype(o_ref.dtype)                        # residual 2


def prepare_params(p):
    """One-time packing of the module weights into the 3 kernel weight operands.

    Done once (not per forward), per review: avoids per-call reshape/transpose
    XLA ops and collapses 16 weight tensors into 3 DMA descriptors.
    Assumes (in, out) layout; PyTorch nn.Linear state_dicts must be transposed
    before this step.
    """
    wqkv = jnp.concatenate([p["wq"], p["wk"], p["wv"]], axis=1)      # (E, 3E)
    w_in = jnp.concatenate([p["w1"], wqkv], axis=1)                  # (E, HID+3E) = (32, 224)
    w_out = jnp.concatenate([p["w2"], p["wo"]], axis=0)              # (HID+E, E)  = (160, 32)

    def row(v, width):
        r = jnp.zeros((1, VEC_W), jnp.float32)
        return r.at[0, :width].set(jnp.asarray(v, jnp.float32).reshape(-1))

    bqkv = jnp.concatenate([p["bq"].reshape(-1), p["bk"].reshape(-1),
                            p["bv"].reshape(-1)])
    vecs = jnp.concatenate([
        row(p["ln1_w"], E), row(p["ln1_b"], E),
        row(bqkv, 3 * E),
        row(p["bo"], E),
        row(p["ln2_w"], E), row(p["ln2_b"], E),
        row(p["b1"], HID), row(p["b2"], E),
    ], axis=0)                                                       # (8, 128)
    return {"w_in": w_in, "w_out": w_out, "vecs": vecs}


@jax.jit
def transformer_encoder(x, packed):
    """x: (B, S, E) float32.  packed: output of prepare_params()."""
    x2d = x.reshape(ROWS, E)
    args = (x2d, packed["w_in"], packed["w_out"], packed["vecs"])
    full = lambda a: pl.BlockSpec(a.shape, lambda i, nd=a.ndim: (0,) * nd)

    out2d = pl.pallas_call(
        encoder_kernel,
        out_shape=jax.ShapeDtypeStruct((ROWS, E), x.dtype),
        grid_spec=pltpu.PrefetchScalarGridSpec(
            num_scalar_prefetch=0,
            grid=(1,),                                   # single step, all-resident
            in_specs=[full(a) for a in args],
            out_specs=pl.BlockSpec((ROWS, E), lambda i: (0, 0)),
        ),
        compiler_params=pltpu.CompilerParams(
            dimension_semantics=("arbitrary",)),
    )(*args)
    return out2d.reshape(B, S, E)


def init_params(key):
    ks = jax.random.split(key, 10)
    scale = 0.02
    return {
        "ln1_w": jnp.ones((1, E), jnp.float32),
        "ln1_b": jnp.zeros((1, E), jnp.float32),
        # q/k/v/out projections already in (in, out) layout
        "wq": scale * jax.random.normal(ks[0], (E, E), jnp.float32),
        "bq": scale * jax.random.normal(ks[1], (1, E), jnp.float32),
        "wk": scale * jax.random.normal(ks[2], (E, E), jnp.float32),
        "bk": scale * jax.random.normal(ks[3], (1, E), jnp.float32),
        "wv": scale * jax.random.normal(ks[4], (E, E), jnp.float32),
        "bv": scale * jax.random.normal(ks[5], (1, E), jnp.float32),
        "wo": scale * jax.random.normal(ks[6], (E, E), jnp.float32),
        "bo": jnp.zeros((1, E), jnp.float32),
        "ln2_w": jnp.ones((1, E), jnp.float32),
        "ln2_b": jnp.zeros((1, E), jnp.float32),
        "w1": scale * jax.random.normal(ks[7], (E, HID), jnp.float32),
        "b1": jnp.zeros((1, HID), jnp.float32),
        "w2": scale * jax.random.normal(ks[8], (HID, E), jnp.float32),
        "b2": jnp.zeros((1, E), jnp.float32),
    }


def reference(x, p):
    """Pure-JAX reference reproducing the PyTorch forward (pre-norm block)."""
    h = _layernorm(x, p["ln1_w"][0], p["ln1_b"][0])
    q = h @ p["wq"] + p["bq"][0]
    k = h @ p["wk"] + p["bk"][0]
    v = h @ p["wv"] + p["bv"][0]
    qh = q.reshape(B, S, H, DH).transpose(0, 2, 1, 3)
    kh = k.reshape(B, S, H, DH).transpose(0, 2, 1, 3)
    vh = v.reshape(B, S, H, DH).transpose(0, 2, 1, 3)
    s = jnp.einsum("bhqd,bhkd->bhqk", qh, kh) / math.sqrt(DH)
    a = jax.nn.softmax(s, axis=-1)
    o = jnp.einsum("bhqk,bhkd->bhqd", a, vh).transpose(0, 2, 1, 3).reshape(B, S, E)
    o = o @ p["wo"] + p["bo"][0]
    x1 = o + x
    h2 = _layernorm(x1, p["ln2_w"][0], p["ln2_b"][0])
    m = _gelu_exact(h2 @ p["w1"] + p["b1"][0])
    m = m @ p["w2"] + p["b2"][0]
    return m + x1


if __name__ == "__main__":
    key = jax.random.PRNGKey(0)
    kx, kp = jax.random.split(key)
    x = jax.random.normal(kx, (B, S, E), jnp.float32)
    params = init_params(kp)
    packed = jax.tree_util.tree_map(jax.block_until_ready, prepare_params(params))

    out = jax.block_until_ready(transformer_encoder(x, packed))
    ref = reference(x, params)

    assert out.shape == (B, S, E)
    # pl.reciprocal(approx=True) in the softmax is the only deviation from
    # exact f32 math; everything else matches the reference bit-for-regime.
    assert jnp.allclose(out, ref, atol=2e-4, rtol=2e-4), "mismatch vs reference"
    print("KERNEL_OK")
</pallas_src>

<mosaic_0001>
module attributes {stable_mosaic.version = 11 : i64} {
  func.func @encoder_kernel(%arg0: i32, %arg1: memref<16x32xf32, #tpu.memory_space<vmem>>, %arg2: memref<32x224xf32, #tpu.memory_space<vmem>>, %arg3: memref<160x32xf32, #tpu.memory_space<vmem>>, %arg4: memref<8x128xf32, #tpu.memory_space<vmem>>, %arg5: memref<16x32xf32, #tpu.memory_space<vmem>>) attributes {dimension_semantics = [#tpu.dimension_semantics<arbitrary>], iteration_bounds = array<i64: 1>, scalar_prefetch = 0 : i64, scratch_operands = 0 : i64, tpu.core_type = #tpu.core_type<tc>, window_params = [{pipeline_mode = #tpu.pipeline_mode<synchronous>, transform_indices = @transform_0, window_bounds = array<i64: 16, 32>}, {pipeline_mode = #tpu.pipeline_mode<synchronous>, transform_indices = @transform_1, window_bounds = array<i64: 32, 224>}, {pipeline_mode = #tpu.pipeline_mode<synchronous>, transform_indices = @transform_2, window_bounds = array<i64: 160, 32>}, {pipeline_mode = #tpu.pipeline_mode<synchronous>, transform_indices = @transform_3, window_bounds = array<i64: 8, 128>}, {pipeline_mode = #tpu.pipeline_mode<synchronous>, transform_indices = @transform_4, window_bounds = array<i64: 16, 32>}]} {
    %c0 = arith.constant 0 : index
    %c0_0 = arith.constant 0 : index
    %0 = vector.load %arg1[%c0, %c0_0] : memref<16x32xf32, #tpu.memory_space<vmem>>, vector<16x32xf32>
    %c0_1 = arith.constant 0 : index
    %c0_2 = arith.constant 0 : index
    %1 = vector.load %arg4[%c0_1, %c0_2] : memref<8x128xf32, #tpu.memory_space<vmem>>, vector<8x128xf32>
    %2 = vector.extract_strided_slice %1 {offsets = [0, 0], sizes = [1, 32], strides = [1, 1]} : vector<8x128xf32> to vector<1x32xf32>
    %3 = vector.extract_strided_slice %1 {offsets = [1, 0], sizes = [1, 32], strides = [1, 1]} : vector<8x128xf32> to vector<1x32xf32>
    %4 = vector.extract_strided_slice %1 {offsets = [2, 0], sizes = [1, 96], strides = [1, 1]} : vector<8x128xf32> to vector<1x96xf32>
    %5 = vector.extract_strided_slice %1 {offsets = [3, 0], sizes = [1, 32], strides = [1, 1]} : vector<8x128xf32> to vector<1x32xf32>
    %6 = vector.extract_strided_slice %1 {offsets = [4, 0], sizes = [1, 32], strides = [1, 1]} : vector<8x128xf32> to vector<1x32xf32>
    %7 = vector.extract_strided_slice %1 {offsets = [5, 0], sizes = [1, 32], strides = [1, 1]} : vector<8x128xf32> to vector<1x32xf32>
    %8 = vector.extract_strided_slice %1 {offsets = [6, 0], sizes = [1, 128], strides = [1, 1]} : vector<8x128xf32> to vector<1x128xf32>
    %9 = vector.extract_strided_slice %1 {offsets = [7, 0], sizes = [1, 32], strides = [1, 1]} : vector<8x128xf32> to vector<1x32xf32>
    %cst = arith.constant dense<0.000000e+00> : vector<16xf32>
    %10 = vector.multi_reduction <add>, %0, %cst [1] : vector<16x32xf32> to vector<16xf32>
    %11 = vector.shape_cast %10 : vector<16xf32> to vector<16x1xf32>
    %cst_3 = arith.constant 3.200000e+01 : f32
    %12 = vector.broadcast %cst_3 : f32 to vector<16x1xf32>
    %13 = arith.divf %11, %12 : vector<16x1xf32>
    %14 = vector.broadcast %13 : vector<16x1xf32> to vector<16x32xf32>
    %15 = arith.subf %0, %14 : vector<16x32xf32>
    %16 = arith.mulf %15, %15 : vector<16x32xf32>
    %cst_4 = arith.constant dense<0.000000e+00> : vector<16xf32>
    %17 = vector.multi_reduction <add>, %16, %cst_4 [1] : vector<16x32xf32> to vector<16xf32>
    %18 = vector.shape_cast %17 : vector<16xf32> to vector<16x1xf32>
    %cst_5 = arith.constant 3.200000e+01 : f32
    %19 = vector.broadcast %cst_5 : f32 to vector<16x1xf32>
    %20 = arith.divf %18, %19 : vector<16x1xf32>
    %21 = vector.broadcast %13 : vector<16x1xf32> to vector<16x32xf32>
    %22 = arith.subf %0, %21 : vector<16x32xf32>
    %cst_6 = arith.constant 9.99999974E-6 : f32
    %23 = vector.broadcast %cst_6 : f32 to vector<16x1xf32>
    %24 = arith.addf %20, %23 : vector<16x1xf32>
    %25 = math.rsqrt %24 : vector<16x1xf32>
    %26 = vector.broadcast %25 : vector<16x1xf32> to vector<16x32xf32>
    %27 = arith.mulf %22, %26 : vector<16x32xf32>
    %28 = vector.broadcast %2 : vector<1x32xf32> to vector<16x32xf32>
    %29 = arith.mulf %27, %28 : vector<16x32xf32>
    %30 = vector.broadcast %3 : vector<1x32xf32> to vector<16x32xf32>
    %31 = arith.addf %29, %30 : vector<16x32xf32>
    %c0_7 = arith.constant 0 : index
    %c128 = arith.constant 128 : index
    %32 = vector.load %arg2[%c0_7, %c128] : memref<32x224xf32, #tpu.memory_space<vmem>>, vector<32x96xf32>
    %cst_8 = arith.constant dense<0.000000e+00> : vector<16x96xf32>
    %33 = tpu.matmul %31, %32, %cst_8 {dimension_numbers = #tpu.dot_dimension_numbers<[1], [0], [0], [1], [0, 0, 1, 1], [], []>} : vector<16x32xf32>, vector<32x96xf32>, vector<16x96xf32> -> vector<16x96xf32>
    %34 = vector.broadcast %4 : vector<1x96xf32> to vector<16x96xf32>
    %35 = arith.addf %33, %34 : vector<16x96xf32>
    %36 = vector.extract_strided_slice %35 {offsets = [0, 0], sizes = [8, 8], strides = [1, 1]} : vector<16x96xf32> to vector<8x8xf32>
    %37 = vector.extract_strided_slice %35 {offsets = [0, 32], sizes = [8, 8], strides = [1, 1]} : vector<16x96xf32> to vector<8x8xf32>
    %38 = vector.extract_strided_slice %35 {offsets = [0, 64], sizes = [8, 8], strides = [1, 1]} : vector<16x96xf32> to vector<8x8xf32>
    %cst_9 = arith.constant dense<0.000000e+00> : vector<8x8xf32>
    %39 = tpu.matmul %36, %37, %cst_9 {dimension_numbers = #tpu.dot_dimension_numbers<[1], [1], [0], [0], [0, 0, 1, 0], [], []>} : vector<8x8xf32>, vector<8x8xf32>, vector<8x8xf32> -> vector<8x8xf32>
    %cst_10 = arith.constant 0.353553385 : f32
    %40 = vector.broadcast %cst_10 : f32 to vector<8x8xf32>
    %41 = arith.mulf %39, %40 : vector<8x8xf32>
    %42 = vector.extract_strided_slice %35 {offsets = [0, 8], sizes = [8, 8], strides = [1, 1]} : vector<16x96xf32> to vector<8x8xf32>
    %43 = vector.extract_strided_slice %35 {offsets = [0, 40], sizes = [8, 8], strides = [1, 1]} : vector<16x96xf32> to vector<8x8xf32>
    %44 = vector.extract_strided_slice %35 {offsets = [0, 72], sizes = [8, 8], strides = [1, 1]} : vector<16x96xf32> to vector<8x8xf32>
    %cst_11 = arith.constant dense<0.000000e+00> : vector<8x8xf32>
    %45 = tpu.matmul %42, %43, %cst_11 {dimension_numbers = #tpu.dot_dimension_numbers<[1], [1], [0], [0], [0, 0, 1, 0], [], []>} : vector<8x8xf32>, vector<8x8xf32>, vector<8x8xf32> -> vector<8x8xf32>
    %cst_12 = arith.constant 0.353553385 : f32
    %46 = vector.broadcast %cst_12 : f32 to vector<8x8xf32>
    %47 = arith.mulf %45, %46 : vector<8x8xf32>
    %48 = vector.extract_strided_slice %35 {offsets = [0, 16], sizes = [8, 8], strides = [1, 1]} : vector<16x96xf32> to vector<8x8xf32>
    %49 = vector.extract_strided_slice %35 {offsets = [0, 48], sizes = [8, 8], strides = [1, 1]} : vector<16x96xf32> to vector<8x8xf32>
    %50 = vector.extract_strided_slice %35 {offsets = [0, 80], sizes = [8, 8], strides = [1, 1]} : vector<16x96xf32> to vector<8x8xf32>
    %cst_13 = arith.constant dense<0.000000e+00> : vector<8x8xf32>
    %51 = tpu.matmul %48, %49, %cst_13 {dimension_numbers = #tpu.dot_dimension_numbers<[1], [1], [0], [0], [0, 0, 1, 0], [], []>} : vector<8x8xf32>, vector<8x8xf32>, vector<8x8xf32> -> vector<8x8xf32>
    %cst_14 = arith.constant 0.353553385 : f32
    %52 = vector.broadcast %cst_14 : f32 to vector<8x8xf32>
    %53 = arith.mulf %51, %52 : vector<8x8xf32>
    %54 = vector.extract_strided_slice %35 {offsets = [0, 24], sizes = [8, 8], strides = [1, 1]} : vector<16x96xf32> to vector<8x8xf32>
    %55 = vector.extract_strided_slice %35 {offsets = [0, 56], sizes = [8, 8], strides = [1, 1]} : vector<16x96xf32> to vector<8x8xf32>
    %56 = vector.extract_strided_slice %35 {offsets = [0, 88], sizes = [8, 8], strides = [1, 1]} : vector<16x96xf32> to vector<8x8xf32>
    %cst_15 = arith.constant dense<0.000000e+00> : vector<8x8xf32>
    %57 = tpu.matmul %54, %55, %cst_15 {dimension_numbers = #tpu.dot_dimension_numbers<[1], [1], [0], [0], [0, 0, 1, 0], [], []>} : vector<8x8xf32>, vector<8x8xf32>, vector<8x8xf32> -> vector<8x8xf32>
    %cst_16 = arith.constant 0.353553385 : f32
    %58 = vector.broadcast %cst_16 : f32 to vector<8x8xf32>
    %59 = arith.mulf %57, %58 : vector<8x8xf32>
    %60 = vector.extract_strided_slice %35 {offsets = [8, 0], sizes = [8, 8], strides = [1, 1]} : vector<16x96xf32> to vector<8x8xf32>
    %61 = vector.extract_strided_slice %35 {offsets = [8, 32], sizes = [8, 8], strides = [1, 1]} : vector<16x96xf32> to vector<8x8xf32>
    %62 = vector.extract_strided_slice %35 {offsets = [8, 64], sizes = [8, 8], strides = [1, 1]} : vector<16x96xf32> to vector<8x8xf32>
    %cst_17 = arith.constant dense<0.000000e+00> : vector<8x8xf32>
    %63 = tpu.matmul %60, %61, %cst_17 {dimension_numbers = #tpu.dot_dimension_numbers<[1], [1], [0], [0], [0, 0, 1, 0], [], []>} : vector<8x8xf32>, vector<8x8xf32>, vector<8x8xf32> -> vector<8x8xf32>
    %cst_18 = arith.constant 0.353553385 : f32
    %64 = vector.broadcast %cst_18 : f32 to vector<8x8xf32>
    %65 = arith.mulf %63, %64 : vector<8x8xf32>
    %66 = vector.extract_strided_slice %35 {offsets = [8, 8], sizes = [8, 8], strides = [1, 1]} : vector<16x96xf32> to vector<8x8xf32>
    %67 = vector.extract_strided_slice %35 {offsets = [8, 40], sizes = [8, 8], strides = [1, 1]} : vector<16x96xf32> to vector<8x8xf32>
    %68 = vector.extract_strided_slice %35 {offsets = [8, 72], sizes = [8, 8], strides = [1, 1]} : vector<16x96xf32> to vector<8x8xf32>
    %cst_19 = arith.constant dense<0.000000e+00> : vector<8x8xf32>
    %69 = tpu.matmul %66, %67, %cst_19 {dimension_numbers = #tpu.dot_dimension_numbers<[1], [1], [0], [0], [0, 0, 1, 0], [], []>} : vector<8x8xf32>, vector<8x8xf32>, vector<8x8xf32> -> vector<8x8xf32>
    %cst_20 = arith.constant 0.353553385 : f32
    %70 = vector.broadcast %cst_20 : f32 to vector<8x8xf32>
    %71 = arith.mulf %69, %70 : vector<8x8xf32>
    %72 = vector.extract_strided_slice %35 {offsets = [8, 16], sizes = [8, 8], strides = [1, 1]} : vector<16x96xf32> to vector<8x8xf32>
    %73 = vector.extract_strided_slice %35 {offsets = [8, 48], sizes = [8, 8], strides = [1, 1]} : vector<16x96xf32> to vector<8x8xf32>
    %74 = vector.extract_strided_slice %35 {offsets = [8, 80], sizes = [8, 8], strides = [1, 1]} : vector<16x96xf32> to vector<8x8xf32>
    %cst_21 = arith.constant dense<0.000000e+00> : vector<8x8xf32>
    %75 = tpu.matmul %72, %73, %cst_21 {dimension_numbers = #tpu.dot_dimension_numbers<[1], [1], [0], [0], [0, 0, 1, 0], [], []>} : vector<8x8xf32>, vector<8x8xf32>, vector<8x8xf32> -> vector<8x8xf32>
    %cst_22 = arith.constant 0.353553385 : f32
    %76 = vector.broadcast %cst_22 : f32 to vector<8x8xf32>
    %77 = arith.mulf %75, %76 : vector<8x8xf32>
    %78 = vector.extract_strided_slice %35 {offsets = [8, 24], sizes = [8, 8], strides = [1, 1]} : vector<16x96xf32> to vector<8x8xf32>
    %79 = vector.extract_strided_slice %35 {offsets = [8, 56], sizes = [8, 8], strides = [1, 1]} : vector<16x96xf32> to vector<8x8xf32>
    %80 = vector.extract_strided_slice %35 {offsets = [8, 88], sizes = [8, 8], strides = [1, 1]} : vector<16x96xf32> to vector<8x8xf32>
    %cst_23 = arith.constant dense<0.000000e+00> : vector<8x8xf32>
    %81 = tpu.matmul %78, %79, %cst_23 {dimension_numbers = #tpu.dot_dimension_numbers<[1], [1], [0], [0], [0, 0, 1, 0], [], []>} : vector<8x8xf32>, vector<8x8xf32>, vector<8x8xf32> -> vector<8x8xf32>
    %cst_24 = arith.constant 0.353553385 : f32
    %82 = vector.broadcast %cst_24 : f32 to vector<8x8xf32>
    %83 = arith.mulf %81, %82 : vector<8x8xf32>
    %84 = tpu.concatenate %41, %47, %53, %59, %65, %71, %77, %83 in 0 : vector<8x8xf32>, vector<8x8xf32>, vector<8x8xf32>, vector<8x8xf32>, vector<8x8xf32>, vector<8x8xf32>, vector<8x8xf32>, vector<8x8xf32> -> vector<64x8xf32>
    %cst_25 = arith.constant dense<0xFF800000> : vector<64xf32>
    %85 = vector.multi_reduction <maximumf>, %84, %cst_25 [1] : vector<64x8xf32> to vector<64xf32>
    %86 = vector.shape_cast %85 : vector<64xf32> to vector<64x1xf32>
    %87 = vector.broadcast %86 : vector<64x1xf32> to vector<64x8xf32>
    %88 = arith.subf %84, %87 : vector<64x8xf32>
    %89 = math.exp %88 : vector<64x8xf32>
    %cst_26 = arith.constant dense<0.000000e+00> : vector<64xf32>
    %90 = vector.multi_reduction <add>, %89, %cst_26 [1] : vector<64x8xf32> to vector<64xf32>
    %91 = vector.shape_cast %90 : vector<64xf32> to vector<64x1xf32>
    %92 = tpu.reciprocal %91 {approx = true} : vector<64x1xf32> -> vector<64x1xf32>
    %93 = vector.broadcast %92 : vector<64x1xf32> to vector<64x8xf32>
    %94 = arith.mulf %89, %93 : vector<64x8xf32>
    %c128_27 = arith.constant 128 : index
    %c0_28 = arith.constant 0 : index
    %95 = vector.load %arg3[%c128_27, %c0_28] : memref<160x32xf32, #tpu.memory_space<vmem>>, vector<32x32xf32>
    %96 = vector.extract_strided_slice %94 {offsets = [0, 0], sizes = [8, 8], strides = [1, 1]} : vector<64x8xf32> to vector<8x8xf32>
    %cst_29 = arith.constant dense<0.000000e+00> : vector<8x8xf32>
    %97 = tpu.matmul %96, %38, %cst_29 {dimension_numbers = #tpu.dot_dimension_numbers<[1], [0], [0], [1], [0, 0, 1, 1], [], []>} : vector<8x8xf32>, vector<8x8xf32>, vector<8x8xf32> -> vector<8x8xf32>
    %98 = vector.extract_strided_slice %95 {offsets = [0, 0], sizes = [8, 32], strides = [1, 1]} : vector<32x32xf32> to vector<8x32xf32>
    %cst_30 = arith.constant dense<0.000000e+00> : vector<8x32xf32>
    %99 = tpu.matmul %97, %98, %cst_30 {dimension_numbers = #tpu.dot_dimension_numbers<[1], [0], [0], [1], [0, 0, 1, 1], [], []>} : vector<8x8xf32>, vector<8x32xf32>, vector<8x32xf32> -> vector<8x32xf32>
    %100 = vector.extract_strided_slice %94 {offsets = [8, 0], sizes = [8, 8], strides = [1, 1]} : vector<64x8xf32> to vector<8x8xf32>
    %cst_31 = arith.constant dense<0.000000e+00> : vector<8x8xf32>
    %101 = tpu.matmul %100, %44, %cst_31 {dimension_numbers = #tpu.dot_dimension_numbers<[1], [0], [0], [1], [0, 0, 1, 1], [], []>} : vector<8x8xf32>, vector<8x8xf32>, vector<8x8xf32> -> vector<8x8xf32>
    %102 = vector.extract_strided_slice %95 {offsets = [8, 0], sizes = [8, 32], strides = [1, 1]} : vector<32x32xf32> to vector<8x32xf32>
    %cst_32 = arith.constant dense<0.000000e+00> : vector<8x32xf32>
    %103 = tpu.matmul %101, %102, %cst_32 {dimension_numbers = #tpu.dot_dimension_numbers<[1], [0], [0], [1], [0, 0, 1, 1], [], []>} : vector<8x8xf32>, vector<8x32xf32>, vector<8x32xf32> -> vector<8x32xf32>
    %104 = arith.addf %99, %103 : vector<8x32xf32>
    %105 = vector.extract_strided_slice %94 {offsets = [16, 0], sizes = [8, 8], strides = [1, 1]} : vector<64x8xf32> to vector<8x8xf32>
    %cst_33 = arith.constant dense<0.000000e+00> : vector<8x8xf32>
    %106 = tpu.matmul %105, %50, %cst_33 {dimension_numbers = #tpu.dot_dimension_numbers<[1], [0], [0], [1], [0, 0, 1, 1], [], []>} : vector<8x8xf32>, vector<8x8xf32>, vector<8x8xf32> -> vector<8x8xf32>
    %107 = vector.extract_strided_slice %95 {offsets = [16, 0], sizes = [8, 32], strides = [1, 1]} : vector<32x32xf32> to vector<8x32xf32>
    %cst_34 = arith.constant dense<0.000000e+00> : vector<8x32xf32>
    %108 = tpu.matmul %106, %107, %cst_34 {dimension_numbers = #tpu.dot_dimension_numbers<[1], [0], [0], [1], [0, 0, 1, 1], [], []>} : vector<8x8xf32>, vector<8x32xf32>, vector<8x32xf32> -> vector<8x32xf32>
    %109 = arith.addf %104, %108 : vector<8x32xf32>
    %110 = vector.extract_strided_slice %94 {offsets = [24, 0], sizes = [8, 8], strides = [1, 1]} : vector<64x8xf32> to vector<8x8xf32>
    %cst_35 = arith.constant dense<0.000000e+00> : vector<8x8xf32>
    %111 = tpu.matmul %110, %56, %cst_35 {dimension_numbers = #tpu.dot_dimension_numbers<[1], [0], [0], [1], [0, 0, 1, 1], [], []>} : vector<8x8xf32>, vector<8x8xf32>, vector<8x8xf32> -> vector<8x8xf32>
    %112 = vector.extract_strided_slice %95 {offsets = [24, 0], sizes = [8, 32], strides = [1, 1]} : vector<32x32xf32> to vector<8x32xf32>
    %cst_36 = arith.constant dense<0.000000e+00> : vector<8x32xf32>
    %113 = tpu.matmul %111, %112, %cst_36 {dimension_numbers = #tpu.dot_dimension_numbers<[1], [0], [0], [1], [0, 0, 1, 1], [], []>} : vector<8x8xf32>, vector<8x32xf32>, vector<8x32xf32> -> vector<8x32xf32>
    %114 = arith.addf %109, %113 : vector<8x32xf32>
    %115 = vector.extract_strided_slice %94 {offsets = [32, 0], sizes = [8, 8], strides = [1, 1]} : vector<64x8xf32> to vector<8x8xf32>
    %cst_37 = arith.constant dense<0.000000e+00> : vector<8x8xf32>
    %116 = tpu.matmul %115, %62, %cst_37 {dimension_numbers = #tpu.dot_dimension_numbers<[1], [0], [0], [1], [0, 0, 1, 1], [], []>} : vector<8x8xf32>, vector<8x8xf32>, vector<8x8xf32> -> vector<8x8xf32>
    %117 = vector.extract_strided_slice %95 {offsets = [0, 0], sizes = [8, 32], strides = [1, 1]} : vector<32x32xf32> to vector<8x32xf32>
    %cst_38 = arith.constant dense<0.000000e+00> : vector<8x32xf32>
    %118 = tpu.matmul %116, %117, %cst_38 {dimension_numbers = #tpu.dot_dimension_numbers<[1], [0], [0], [1], [0, 0, 1, 1], [], []>} : vector<8x8xf32>, vector<8x32xf32>, vector<8x32xf32> -> vector<8x32xf32>
    %119 = vector.extract_strided_slice %94 {offsets = [40, 0], sizes = [8, 8], strides = [1, 1]} : vector<64x8xf32> to vector<8x8xf32>
    %cst_39 = arith.constant dense<0.000000e+00> : vector<8x8xf32>
    %120 = tpu.matmul %119, %68, %cst_39 {dimension_numbers = #tpu.dot_dimension_numbers<[1], [0], [0], [1], [0, 0, 1, 1], [], []>} : vector<8x8xf32>, vector<8x8xf32>, vector<8x8xf32> -> vector<8x8xf32>
    %121 = vector.extract_strided_slice %95 {offsets = [8, 0], sizes = [8, 32], strides = [1, 1]} : vector<32x32xf32> to vector<8x32xf32>
    %cst_40 = arith.constant dense<0.000000e+00> : vector<8x32xf32>
    %122 = tpu.matmul %120, %121, %cst_40 {dimension_numbers = #tpu.dot_dimension_numbers<[1], [0], [0], [1], [0, 0, 1, 1], [], []>} : vector<8x8xf32>, vector<8x32xf32>, vector<8x32xf32> -> vector<8x32xf32>
    %123 = arith.addf %118, %122 : vector<8x32xf32>
    %124 = vector.extract_strided_slice %94 {offsets = [48, 0], sizes = [8, 8], strides = [1, 1]} : vector<64x8xf32> to vector<8x8xf32>
    %cst_41 = arith.constant dense<0.000000e+00> : vector<8x8xf32>
    %125 = tpu.matmul %124, %74, %cst_41 {dimension_numbers = #tpu.dot_dimension_numbers<[1], [0], [0], [1], [0, 0, 1, 1], [], []>} : vector<8x8xf32>, vector<8x8xf32>, vector<8x8xf32> -> vector<8x8xf32>
    %126 = vector.extract_strided_slice %95 {offsets = [16, 0], sizes = [8, 32], strides = [1, 1]} : vector<32x32xf32> to vector<8x32xf32>
    %cst_42 = arith.constant dense<0.000000e+00> : vector<8x32xf32>
    %127 = tpu.matmul %125, %126, %cst_42 {dimension_numbers = #tpu.dot_dimension_numbers<[1], [0], [0], [1], [0, 0, 1, 1], [], []>} : vector<8x8xf32>, vector<8x32xf32>, vector<8x32xf32> -> vector<8x32xf32>
    %128 = arith.addf %123, %127 : vector<8x32xf32>
    %129 = vector.extract_strided_slice %94 {offsets = [56, 0], sizes = [8, 8], strides = [1, 1]} : vector<64x8xf32> to vector<8x8xf32>
    %cst_43 = arith.constant dense<0.000000e+00> : vector<8x8xf32>
    %130 = tpu.matmul %129, %80, %cst_43 {dimension_numbers = #tpu.dot_dimension_numbers<[1], [0], [0], [1], [0, 0, 1, 1], [], []>} : vector<8x8xf32>, vector<8x8xf32>, vector<8x8xf32> -> vector<8x8xf32>
    %131 = vector.extract_strided_slice %95 {offsets = [24, 0], sizes = [8, 32], strides = [1, 1]} : vector<32x32xf32> to vector<8x32xf32>
    %cst_44 = arith.constant dense<0.000000e+00> : vector<8x32xf32>
    %132 = tpu.matmul %130, %131, %cst_44 {dimension_numbers = #tpu.dot_dimension_numbers<[1], [0], [0], [1], [0, 0, 1, 1], [], []>} : vector<8x8xf32>, vector<8x32xf32>, vector<8x32xf32> -> vector<8x32xf32>
    %133 = arith.addf %128, %132 : vector<8x32xf32>
    %134 = tpu.concatenate %114, %133 in 0 : vector<8x32xf32>, vector<8x32xf32> -> vector<16x32xf32>
    %135 = vector.broadcast %5 : vector<1x32xf32> to vector<16x32xf32>
    %136 = arith.addf %134, %135 : vector<16x32xf32>
    %137 = arith.addf %136, %0 : vector<16x32xf32>
    %cst_45 = arith.constant dense<0.000000e+00> : vector<16xf32>
    %138 = vector.multi_reduction <add>, %137, %cst_45 [1] : vector<16x32xf32> to vector<16xf32>
    %139 = vector.shape_cast %138 : vector<16xf32> to vector<16x1xf32>
    %cst_46 = arith.constant 3.200000e+01 : f32
    %140 = vector.broadcast %cst_46 : f32 to vector<16x1xf32>
    %141 = arith.divf %139, %140 : vector<16x1xf32>
    %142 = vector.broadcast %141 : vector<16x1xf32> to vector<16x32xf32>
    %143 = arith.subf %137, %142 : vector<16x32xf32>
    %144 = arith.mulf %143, %143 : vector<16x32xf32>
    %cst_47 = arith.constant dense<0.000000e+00> : vector<16xf32>
    %145 = vector.multi_reduction <add>, %144, %cst_47 [1] : vector<16x32xf32> to vector<16xf32>
    %146 = vector.shape_cast %145 : vector<16xf32> to vector<16x1xf32>
    %cst_48 = arith.constant 3.200000e+01 : f32
    %147 = vector.broadcast %cst_48 : f32 to vector<16x1xf32>
    %148 = arith.divf %146, %147 : vector<16x1xf32>
    %149 = vector.broadcast %141 : vector<16x1xf32> to vector<16x32xf32>
    %150 = arith.subf %137, %149 : vector<16x32xf32>
    %cst_49 = arith.constant 9.99999974E-6 : f32
    %151 = vector.broadcast %cst_49 : f32 to vector<16x1xf32>
    %152 = arith.addf %148, %151 : vector<16x1xf32>
    %153 = math.rsqrt %152 : vector<16x1xf32>
    %154 = vector.broadcast %153 : vector<16x1xf32> to vector<16x32xf32>
    %155 = arith.mulf %150, %154 : vector<16x32xf32>
    %156 = vector.broadcast %6 : vector<1x32xf32> to vector<16x32xf32>
    %157 = arith.mulf %155, %156 : vector<16x32xf32>
    %158 = vector.broadcast %7 : vector<1x32xf32> to vector<16x32xf32>
    %159 = arith.addf %157, %158 : vector<16x32xf32>
    %c0_50 = arith.constant 0 : index
    %c0_51 = arith.constant 0 : index
    %160 = vector.load %arg2[%c0_50, %c0_51] : memref<32x224xf32, #tpu.memory_space<vmem>>, vector<32x128xf32>
    %cst_52 = arith.constant dense<0.000000e+00> : vector<16x128xf32>
    %161 = tpu.matmul %159, %160, %cst_52 {dimension_numbers = #tpu.dot_dimension_numbers<[1], [0], [0], [1], [0, 0, 1, 1], [], []>} : vector<16x32xf32>, vector<32x128xf32>, vector<16x128xf32> -> vector<16x128xf32>
    %162 = vector.broadcast %8 : vector<1x128xf32> to vector<16x128xf32>
    %163 = arith.addf %161, %162 : vector<16x128xf32>
    %cst_53 = arith.constant 5.000000e-01 : f32
    %164 = vector.broadcast %cst_53 : f32 to vector<16x128xf32>
    %165 = arith.mulf %164, %163 : vector<16x128xf32>
    %cst_54 = arith.constant 0.707106769 : f32
    %166 = vector.broadcast %cst_54 : f32 to vector<16x128xf32>
    %167 = arith.mulf %163, %166 : vector<16x128xf32>
    %168 = math.erf %167 : vector<16x128xf32>
    %cst_55 = arith.constant 1.000000e+00 : f32
    %169 = vector.broadcast %cst_55 : f32 to vector<16x128xf32>
    %170 = arith.addf %169, %168 : vector<16x128xf32>
    %171 = arith.mulf %165, %170 : vector<16x128xf32>
    %c0_56 = arith.constant 0 : index
    %c0_57 = arith.constant 0 : index
    %172 = vector.load %arg3[%c0_56, %c0_57] : memref<160x32xf32, #tpu.memory_space<vmem>>, vector<128x32xf32>
    %cst_58 = arith.constant dense<0.000000e+00> : vector<16x32xf32>
    %173 = tpu.matmul %171, %172, %cst_58 {dimension_numbers = #tpu.dot_dimension_numbers<[1], [0], [0], [1], [0, 0, 1, 1], [], []>} : vector<16x128xf32>, vector<128x32xf32>, vector<16x32xf32> -> vector<16x32xf32>
    %174 = vector.broadcast %9 : vector<1x32xf32> to vector<16x32xf32>
    %175 = arith.addf %173, %174 : vector<16x32xf32>
    %176 = arith.addf %175, %137 : vector<16x32xf32>
    %c0_59 = arith.constant 0 : index
    %c0_60 = arith.constant 0 : index
    %177 = vector.load %arg5[%c0_59, %c0_60] : memref<16x32xf32, #tpu.memory_space<vmem>>, vector<16x32xf32>
    tpu.vector_store %arg5[%c0_59, %c0_60], %176 {strides = array<i32>} : memref<16x32xf32, #tpu.memory_space<vmem>>, vector<16x32xf32>,
    return
  }
  func.func @transform_0(%arg0: i32) -> (i32, i32) {
    %c0_i32 = arith.constant 0 : i32
    %c0_i32_0 = arith.constant 0 : i32
    %c0_i32_1 = arith.constant 0 : i32
    return %c0_i32, %c0_i32_0 : i32, i32
  }
  func.func @transform_1(%arg0: i32) -> (i32, i32) {
    %c0_i32 = arith.constant 0 : i32
    %c0_i32_0 = arith.constant 0 : i32
    %c0_i32_1 = arith.constant 0 : i32
    return %c0_i32, %c0_i32_0 : i32, i32
  }
  func.func @transform_2(%arg0: i32) -> (i32, i32) {
    %c0_i32 = arith.constant 0 : i32
    %c0_i32_0 = arith.constant 0 : i32
    %c0_i32_1 = arith.constant 0 : i32
    return %c0_i32, %c0_i32_0 : i32, i32
  }
  func.func @transform_3(%arg0: i32) -> (i32, i32) {
    %c0_i32 = arith.constant 0 : i32
    %c0_i32_0 = arith.constant 0 : i32
    %c0_i32_1 = arith.constant 0 : i32
    return %c0_i32, %c0_i32_0 : i32, i32
  }
  func.func @transform_4(%arg0: i32) -> (i32, i32) {
    %c0_i32 = arith.constant 0 : i32
    %c0_i32_0 = arith.constant 0 : i32
    %c0_i32_1 = arith.constant 0 : i32
    return %c0_i32, %c0_i32_0 : i32, i32
  }
}

</mosaic_0001>

<llo_original>
// kernel: transformer_encoder.1
$region0: #{transformer_encoder.1}
  #allocation0 [shape = 'u32[]', space=smem, size = 0x4, offset = 0x4, fixed_abs, tag = 'smem constant byte address 0x4 - core index']
  #allocation1 [shape = 'u32[144,128]{1,0:T(1,128)}', space=vmem, size = 0x12000, scoped, tag = 'internal scratch']
  %s0 = inlined_call_operand.vmem [shape: f32[16,32], index: 0, kind: input, shape index: {}]
  %s1 = inlined_call_operand.vmem [shape: f32[32,224], index: 1, kind: input, shape index: {}]
  %s2 = inlined_call_operand.vmem [shape: f32[160,32], index: 2, kind: input, shape index: {}]
  %s3 = inlined_call_operand.vmem [shape: f32[8,128], index: 3, kind: input, shape index: {}]
  %s4 = inlined_call_operand.hbm [shape: f32[16,32], index: 4, kind: output, shape index: {}]
  %s5 = sld [smem:[#allocation0]]
  $region26: #{transformer_encoder.1} parent=0
    _
  %s7 = ssub.s32 1, %s5
  %s8 = scalar_select 0, %s7, %s5
  $region1: #{transformer_encoder.1} parent=0
    #allocation2 [shape = 'u8[8192]{0}', space=vmem, size = 0x2000, scoped, tag = 'output window, operand 0, single buffered']
    #allocation3 [shape = 's32[1]{0}', space=sflag, size = 0x4, scoped, tag = 'scoped memory for transformer_encoder.1']
    %9 = vsyncpa [#allocation3], 0
    // Predicated region
    $region2: #{transformer_encoder.1} parent=1 // pred_check
      _
    $region3: #{transformer_encoder.1} parent=1 // pred_check_branch
      %11 = sbr.rel (0) target = $region5
    $region4: #{transformer_encoder.1} parent=1 // pred_region
      _
    $region5: #{transformer_encoder.1} parent=1 // pred_fallthru
      _
    // Predicated region
    $region6: #{transformer_encoder.1} parent=1 // pred_check
      _
    $region7: #{transformer_encoder.1} parent=1 // pred_check_branch
      %13 = sbr.rel (0) target = $region9
    $region8: #{transformer_encoder.1} parent=1 // pred_region
      _
    $region9: #{transformer_encoder.1} parent=1 // pred_fallthru
      _
    // Predicated region
    $region10: #{transformer_encoder.1} parent=1 // pred_check
      _
    $region11: #{transformer_encoder.1} parent=1 // pred_check_branch
      %15 = sbr.rel (0) target = $region13
    $region12: #{transformer_encoder.1} parent=1 // pred_region
      _
    $region13: #{transformer_encoder.1} parent=1 // pred_fallthru
      _
    // Predicated region
    $region14: #{transformer_encoder.1} parent=1 // pred_check
      _
    $region15: #{transformer_encoder.1} parent=1 // pred_check_branch
      %17 = sbr.rel (0) target = $region17
    $region16: #{transformer_encoder.1} parent=1 // pred_region
      _
    $region17: #{transformer_encoder.1} parent=1 // pred_fallthru
      _
    %v18 = vld [vmem:[%s0] sm:$0xff]
    %v19 = vld [vmem:[%s0 + $0x8] sm:$0xff]
    %v20 = vld [vmem:[%s3] sm:$0xff]
    %vm21 = vcmask 261120
    %v22 = vsel %vm21, %v18, 0.0
    %23 = vadd.xlane.f32.xlu0 %v22
    %v24 = vpop.xlane.xlu0 %23
    %v25 = vsel %vm21, %v19, 0.0
    %26 = vadd.xlane.f32.xlu0 %v25
    %v27 = vpop.xlane.xlu0 %26
    %v28 = vrcp.pop 32.0
    %v29 = vmul.f32 %v24, %v28
    %v30 = vmul.f32 %v27, %v28
    %v31 = vsub.f32 %v18, %v29
    %v32 = vsub.f32 %v19, %v30
    %v33 = vmul.f32 %v31, %v31
    %v34 = vmul.f32 %v32, %v32
    %v35 = vsel %vm21, %v33, 0.0
    %36 = vadd.xlane.f32.xlu0 %v35
    %v37 = vpop.xlane.xlu0 %36
    %v38 = vsel %vm21, %v34, 0.0
    %39 = vadd.xlane.f32.xlu0 %v38
    %v40 = vpop.xlane.xlu0 %39
    %v41 = vmul.f32 %v37, %v28
    %v42 = vmul.f32 %v40, %v28
    %v43 = vadd.f32 %v41, 1e-05
    %v44 = vadd.f32 %v42, 1e-05
    %v45 = vrsqrt.pop %v43
    %v46 = vrsqrt.pop %v44
    %v47 = vmul.f32 %v31, %v45
    %v48 = vmul.f32 %v32, %v46
    %v49 = vlaneseq
    %v50 = vshrl.u32 %v49, 7
    %v51 = vsub.s32 0, %v50
    %v52 = vrot.slane %v20, %v51
    %v53 = vmul.f32 %v47, %v52
    %v54 = vmul.f32 %v48, %v52
    %v55 = vlaneseq
    %v56 = vshrl.u32 %v55, 7
    %v57 = vsub.s32 1, %v56
    %v58 = vrot.slane %v20, %v57
    %v59 = vadd.f32 %v53, %v58
    %v60 = vadd.f32 %v54, %v58
    %v61 = vld [vmem:[%s1 + $0x8] sm:$0xff]
    %v62 = vld [vmem:[%s1 + $0x18] sm:$0xff]
    %v63 = vld [vmem:[%s1 + $0x28] sm:$0xff]
    %v64 = vld [vmem:[%s1 + $0x38] sm:$0xff]
    %v65 = vlaneseq
    %v66 = vshrl.u32 %v65, 7
    %v67 = vsub.s32 2, %v66
    %v68 = vrot.slane %v20, %v67
    %v70 = vsel %vm21, %v59, 0
    %v73 = vsel %vm21, %v60, 0
    %75 = vmatprep.subr.mxu0 0.0
    %76 = vmatpush1.msra.mxu0 0.0
    %77 = vmatprep.subr.mxu0 0.0
    %78 = vmatpush1.msra.mxu0 0.0
    %79 = vmatprep.subr.mxu0 0.0
    %80 = vmatpush1.msra.mxu0 0.0
    %81 = vmatprep.subr.mxu0 0.0
    %82 = vmatpush1.msra.mxu0 0.0
    %83 = vmatprep.subr.mxu0 0.0
    %84 = vmatpush1.msra.mxu0 0.0
    %85 = vmatprep.subr.mxu0 0.0
    %86 = vmatpush1.msra.mxu0 0.0
    %87 = vmatprep.subr.mxu0 0.0
    %88 = vmatpush1.msra.mxu0 0.0
    %89 = vmatprep.subr.mxu0 0.0
    %90 = vmatpush1.msra.mxu0 0.0
    %91 = vmatprep.subr.mxu0 0.0
    %92 = vmatpush1.msra.mxu0 0.0
    %93 = vmatprep.subr.mxu0 0.0
    %94 = vmatpush1.msra.mxu0 0.0
    %95 = vmatprep.subr.mxu0 0.0
    %96 = vmatpush1.msra.mxu0 0.0
    %97 = vmatprep.subr.mxu0 0.0
    %98 = vmatpush1.msra.mxu0 0.0
    %99 = vmatprep.subr.mxu0 0.0
    %100 = vmatpush1.msra.mxu0 %v64
    %101 = vmatprep.subr.mxu0 0.0
    %102 = vmatpush1.msra.mxu0 %v63
    %103 = vmatprep.subr.mxu0 0.0
    %104 = vmatpush1.msra.mxu0 %v62
    %105 = vmatprep.subr.mxu0 0.0
    %106 = vmatpush1.msra.mxu0 %v61
    %107 = vmatprep.subr.mxu0 0.0
    %108 = vmatpush2.msra.mxu0 0.0
    %109 = vmatprep.subr.mxu0 0.0
    %110 = vmatpush2.msra.mxu0 0.0
    %111 = vmatprep.subr.mxu0 0.0
    %112 = vmatpush2.msra.mxu0 0.0
    %113 = vmatprep.subr.mxu0 0.0
    %114 = vmatpush2.msra.mxu0 0.0
    %115 = vmatprep.subr.mxu0 0.0
    %116 = vmatpush2.msra.mxu0 0.0
    %117 = vmatprep.subr.mxu0 0.0
    %118 = vmatpush2.msra.mxu0 0.0
    %119 = vmatprep.subr.mxu0 0.0
    %120 = vmatpush2.msra.mxu0 0.0
    %121 = vmatprep.subr.mxu0 0.0
    %122 = vmatpush2.msra.mxu0 0.0
    %123 = vmatprep.subr.mxu0 0.0
    %124 = vmatpush2.msra.mxu0 0.0
    %125 = vmatprep.subr.mxu0 0.0
    %126 = vmatpush2.msra.mxu0 0.0
    %127 = vmatprep.subr.mxu0 0.0
    %128 = vmatpush2.msra.mxu0 0.0
    %129 = vmatprep.subr.mxu0 0.0
    %130 = vmatpush2.msra.mxu0 0.0
    %131 = vmatprep.subr.mxu0 0.0
    %132 = vmatpush2.msra.mxu0 0.0
    %133 = vmatprep.subr.mxu0 0.0
    %134 = vmatpush2.msra.mxu0 0.0
    %135 = vmatprep.subr.mxu0 0.0
    %136 = vmatpush2.msra.mxu0 0.0
    %137 = vmatprep.subr.mxu0 0.0
    %138 = vmatpush2.msra.mxu0 0.0
    %139 = vmatprep.mubr.f32.mxu0 0.0
    %140 = vmatmul.mubr.f32.gmra.mxu0 %v70
    %v141 = vpop.f32.mrf.mxu0
    %v142 = vadd.f32 %v68, %v141
    %v143 = vpop.f32.mrf.mxu0
    %144 = vmatprep.mubr.f32.mxu0 0.0
    %145 = vmatmul.mubr.f32.gmra.mxu0 %v73
    %v146 = vpop.f32.mrf.mxu0
    %v147 = vadd.f32 %v68, %v146
    %v148 = vpop.f32.mrf.mxu0
    %149 = vdwg.mxu0
    %151 = vrot.lane.b32.xlu0 %v142, 96
    %v152 = vpop.permute.xlu0 %151
    %vm153 = vcmask 64512
    %v154 = vsel %vm153, %v142, 0
    %v156 = vsel %vm153, %v152, 0
    %158 = vmatprep.subr.mxu0 0.0
    %159 = vmatpush1.xpose.msra.mxu0 0.0
    %160 = vmatprep.subr.mxu0 0.0
    %161 = vmatpush1.xpose.msra.mxu0 0.0
    %162 = vmatprep.subr.mxu0 0.0
    %163 = vmatpush1.xpose.msra.mxu0 0.0
    %164 = vmatprep.subr.mxu0 0.0
    %165 = vmatpush1.xpose.msra.mxu0 0.0
    %166 = vmatprep.subr.mxu0 0.0
    %167 = vmatpush1.xpose.msra.mxu0 0.0
    %168 = vmatprep.subr.mxu0 0.0
    %169 = vmatpush1.xpose.msra.mxu0 0.0
    %170 = vmatprep.subr.mxu0 0.0
    %171 = vmatpush1.xpose.msra.mxu0 0.0
    %172 = vmatprep.subr.mxu0 0.0
    %173 = vmatpush1.xpose.msra.mxu0 0.0
    %174 = vmatprep.subr.mxu0 0.0
    %175 = vmatpush1.xpose.msra.mxu0 0.0
    %176 = vmatprep.subr.mxu0 0.0
    %177 = vmatpush1.xpose.msra.mxu0 0.0
    %178 = vmatprep.subr.mxu0 0.0
    %179 = vmatpush1.xpose.msra.mxu0 0.0
    %180 = vmatprep.subr.mxu0 0.0
    %181 = vmatpush1.xpose.msra.mxu0 0.0
    %182 = vmatprep.subr.mxu0 0.0
    %183 = vmatpush1.xpose.msra.mxu0 0.0
    %184 = vmatprep.subr.mxu0 0.0
    %185 = vmatpush1.xpose.msra.mxu0 0.0
    %186 = vmatprep.subr.mxu0 0.0
    %187 = vmatpush1.xpose.msra.mxu0 0.0
    %188 = vmatprep.subr.mxu0 0.0
    %189 = vmatpush1.xpose.msra.mxu0 %v156
    %190 = vmatprep.subr.mxu0 0.0
    %191 = vmatpush2.xpose.msra.mxu0 0.0
    %192 = vmatprep.subr.mxu0 0.0
    %193 = vmatpush2.xpose.msra.mxu0 0.0
    %194 = vmatprep.subr.mxu0 0.0
    %195 = vmatpush2.xpose.msra.mxu0 0.0
    %196 = vmatprep.subr.mxu0 0.0
    %197 = vmatpush2.xpose.msra.mxu0 0.0
    %198 = vmatprep.subr.mxu0 0.0
    %199 = vmatpush2.xpose.msra.mxu0 0.0
    %200 = vmatprep.subr.mxu0 0.0
    %201 = vmatpush2.xpose.msra.mxu0 0.0
    %202 = vmatprep.subr.mxu0 0.0
    %203 = vmatpush2.xpose.msra.mxu0 0.0
    %204 = vmatprep.subr.mxu0 0.0
    %205 = vmatpush2.xpose.msra.mxu0 0.0
    %206 = vmatprep.subr.mxu0 0.0
    %207 = vmatpush2.xpose.msra.mxu0 0.0
    %208 = vmatprep.subr.mxu0 0.0
    %209 = vmatpush2.xpose.msra.mxu0 0.0
    %210 = vmatprep.subr.mxu0 0.0
    %211 = vmatpush2.xpose.msra.mxu0 0.0
    %212 = vmatprep.subr.mxu0 0.0
    %213 = vmatpush2.xpose.msra.mxu0 0.0
    %214 = vmatprep.subr.mxu0 0.0
    %215 = vmatpush2.xpose.msra.mxu0 0.0
    %216 = vmatprep.subr.mxu0 0.0
    %217 = vmatpush2.xpose.msra.mxu0 0.0
    %218 = vmatprep.subr.mxu0 0.0
    %219 = vmatpush2.xpose.msra.mxu0 0.0
    %220 = vmatprep.subr.mxu0 0.0
    %221 = vmatpush2.xpose.msra.mxu0 0.0
    %222 = vmatprep.mubr.f32.mxu0 0.0
    %223 = vmatmul.mubr.f32.gmra.mxu0 %v154
    %v224 = vpop.f32.mrf.mxu0
    %v225 = vadd.f32 0.0, %v224
    %v226 = vpop.f32.mrf.mxu0
    %227 = vdwg.mxu0
    %v228 = vmul.f32 %v225, 0.35355338
    %229 = vrot.lane.b32.xlu0 %v142, 120
    %v230 = vpop.permute.xlu0 %229
    %231 = vrot.lane.b32.xlu0 %v142, 88
    %v232 = vpop.permute.xlu0 %231
    %v233 = vsel %vm153, %v230, 0
    %v235 = vsel %vm153, %v232, 0
    %237 = vmatprep.subr.mxu0 0.0
    %238 = vmatpush1.xpose.msra.mxu0 0.0
    %239 = vmatprep.subr.mxu0 0.0
    %240 = vmatpush1.xpose.msra.mxu0 0.0
    %241 = vmatprep.subr.mxu0 0.0
    %242 = vmatpush1.xpose.msra.mxu0 0.0
    %243 = vmatprep.subr.mxu0 0.0
    %244 = vmatpush1.xpose.msra.mxu0 0.0
    %245 = vmatprep.subr.mxu0 0.0
    %246 = vmatpush1.xpose.msra.mxu0 0.0
    %247 = vmatprep.subr.mxu0 0.0
    %248 = vmatpush1.xpose.msra.mxu0 0.0
    %249 = vmatprep.subr.mxu0 0.0
    %250 = vmatpush1.xpose.msra.mxu0 0.0
    %251 = vmatprep.subr.mxu0 0.0
    %252 = vmatpush1.xpose.msra.mxu0 0.0
    %253 = vmatprep.subr.mxu0 0.0
    %254 = vmatpush1.xpose.msra.mxu0 0.0
    %255 = vmatprep.subr.mxu0 0.0
    %256 = vmatpush1.xpose.msra.mxu0 0.0
    %257 = vmatprep.subr.mxu0 0.0
    %258 = vmatpush1.xpose.msra.mxu0 0.0
    %259 = vmatprep.subr.mxu0 0.0
    %260 = vmatpush1.xpose.msra.mxu0 0.0
    %261 = vmatprep.subr.mxu0 0.0
    %262 = vmatpush1.xpose.msra.mxu0 0.0
    %263 = vmatprep.subr.mxu0 0.0
    %264 = vmatpush1.xpose.msra.mxu0 0.0
    %265 = vmatprep.subr.mxu0 0.0
    %266 = vmatpush1.xpose.msra.mxu0 0.0
    %267 = vmatprep.subr.mxu0 0.0
    %268 = vmatpush1.xpose.msra.mxu0 %v235
    %269 = vmatprep.subr.mxu0 0.0
    %270 = vmatpush2.xpose.msra.mxu0 0.0
    %271 = vmatprep.subr.mxu0 0.0
    %272 = vmatpush2.xpose.msra.mxu0 0.0
    %273 = vmatprep.subr.mxu0 0.0
    %274 = vmatpush2.xpose.msra.mxu0 0.0
    %275 = vmatprep.subr.mxu0 0.0
    %276 = vmatpush2.xpose.msra.mxu0 0.0
    %277 = vmatprep.subr.mxu0 0.0
    %278 = vmatpush2.xpose.msra.mxu0 0.0
    %279 = vmatprep.subr.mxu0 0.0
    %280 = vmatpush2.xpose.msra.mxu0 0.0
    %281 = vmatprep.subr.mxu0 0.0
    %282 = vmatpush2.xpose.msra.mxu0 0.0
    %283 = vmatprep.subr.mxu0 0.0
    %284 = vmatpush2.xpose.msra.mxu0 0.0
    %285 = vmatprep.subr.mxu0 0.0
    %286 = vmatpush2.xpose.msra.mxu0 0.0
    %287 = vmatprep.subr.mxu0 0.0
    %288 = vmatpush2.xpose.msra.mxu0 0.0
    %289 = vmatprep.subr.mxu0 0.0
    %290 = vmatpush2.xpose.msra.mxu0 0.0
    %291 = vmatprep.subr.mxu0 0.0
    %292 = vmatpush2.xpose.msra.mxu0 0.0
    %293 = vmatprep.subr.mxu0 0.0
    %294 = vmatpush2.xpose.msra.mxu0 0.0
    %295 = vmatprep.subr.mxu0 0.0
    %296 = vmatpush2.xpose.msra.mxu0 0.0
    %297 = vmatprep.subr.mxu0 0.0
    %298 = vmatpush2.xpose.msra.mxu0 0.0
    %299 = vmatprep.subr.mxu0 0.0
    %300 = vmatpush2.xpose.msra.mxu0 0.0
    %301 = vmatprep.mubr.f32.mxu0 0.0
    %302 = vmatmul.mubr.f32.gmra.mxu0 %v233
    %v303 = vpop.f32.mrf.mxu0
    %v304 = vadd.f32 0.0, %v303
    %v305 = vpop.f32.mrf.mxu0
    %306 = vdwg.mxu0
    %v307 = vmul.f32 %v304, 0.35355338
    %308 = vrot.lane.b32.xlu0 %v142, 112
    %v309 = vpop.permute.xlu0 %308
    %310 = vrot.lane.b32.xlu0 %v142, 80
    %v311 = vpop.permute.xlu0 %310
    %v312 = vsel %vm153, %v309, 0
    %v314 = vsel %vm153, %v311, 0
    %316 = vmatprep.subr.mxu0 0.0
    %317 = vmatpush1.xpose.msra.mxu0 0.0
    %318 = vmatprep.subr.mxu0 0.0
    %319 = vmatpush1.xpose.msra.mxu0 0.0
    %320 = vmatprep.subr.mxu0 0.0
    %321 = vmatpush1.xpose.msra.mxu0 0.0
    %322 = vmatprep.subr.mxu0 0.0
    %323 = vmatpush1.xpose.msra.mxu0 0.0
    %324 = vmatprep.subr.mxu0 0.0
    %325 = vmatpush1.xpose.msra.mxu0 0.0
    %326 = vmatprep.subr.mxu0 0.0
    %327 = vmatpush1.xpose.msra.mxu0 0.0
    %328 = vmatprep.subr.mxu0 0.0
    %329 = vmatpush1.xpose.msra.mxu0 0.0
    %330 = vmatprep.subr.mxu0 0.0
    %331 = vmatpush1.xpose.msra.mxu0 0.0
    %332 = vmatprep.subr.mxu0 0.0
    %333 = vmatpush1.xpose.msra.mxu0 0.0
    %334 = vmatprep.subr.mxu0 0.0
    %335 = vmatpush1.xpose.msra.mxu0 0.0
    %336 = vmatprep.subr.mxu0 0.0
    %337 = vmatpush1.xpose.msra.mxu0 0.0
    %338 = vmatprep.subr.mxu0 0.0
    %339 = vmatpush1.xpose.msra.mxu0 0.0
    %340 = vmatprep.subr.mxu0 0.0
    %341 = vmatpush1.xpose.msra.mxu0 0.0
    %342 = vmatprep.subr.mxu0 0.0
    %343 = vmatpush1.xpose.msra.mxu0 0.0
    %344 = vmatprep.subr.mxu0 0.0
    %345 = vmatpush1.xpose.msra.mxu0 0.0
    %346 = vmatprep.subr.mxu0 0.0
    %347 = vmatpush1.xpose.msra.mxu0 %v314
    %348 = vmatprep.subr.mxu0 0.0
    %349 = vmatpush2.xpose.msra.mxu0 0.0
    %350 = vmatprep.subr.mxu0 0.0
    %351 = vmatpush2.xpose.msra.mxu0 0.0
    %352 = vmatprep.subr.mxu0 0.0
    %353 = vmatpush2.xpose.msra.mxu0 0.0
    %354 = vmatprep.subr.mxu0 0.0
    %355 = vmatpush2.xpose.msra.mxu0 0.0
    %356 = vmatprep.subr.mxu0 0.0
    %357 = vmatpush2.xpose.msra.mxu0 0.0
    %358 = vmatprep.subr.mxu0 0.0
    %359 = vmatpush2.xpose.msra.mxu0 0.0
    %360 = vmatprep.subr.mxu0 0.0
    %361 = vmatpush2.xpose.msra.mxu0 0.0
    %362 = vmatprep.subr.mxu0 0.0
    %363 = vmatpush2.xpose.msra.mxu0 0.0
    %364 = vmatprep.subr.mxu0 0.0
    %365 = vmatpush2.xpose.msra.mxu0 0.0
    %366 = vmatprep.subr.mxu0 0.0
    %367 = vmatpush2.xpose.msra.mxu0 0.0
    %368 = vmatprep.subr.mxu0 0.0
    %369 = vmatpush2.xpose.msra.mxu0 0.0
    %370 = vmatprep.subr.mxu0 0.0
    %371 = vmatpush2.xpose.msra.mxu0 0.0
    %372 = vmatprep.subr.mxu0 0.0
    %373 = vmatpush2.xpose.msra.mxu0 0.0
    %374 = vmatprep.subr.mxu0 0.0
    %375 = vmatpush2.xpose.msra.mxu0 0.0
    %376 = vmatprep.subr.mxu0 0.0
    %377 = vmatpush2.xpose.msra.mxu0 0.0
    %378 = vmatprep.subr.mxu0 0.0
    %379 = vmatpush2.xpose.msra.mxu0 0.0
    %380 = vmatprep.mubr.f32.mxu0 0.0
    %381 = vmatmul.mubr.f32.gmra.mxu0 %v312
    %v382 = vpop.f32.mrf.mxu0
    %v383 = vadd.f32 0.0, %v382
    %v384 = vpop.f32.mrf.mxu0
    %385 = vdwg.mxu0
    %v386 = vmul.f32 %v383, 0.35355338
    %387 = vrot.lane.b32.xlu0 %v142, 104
    %v388 = vpop.permute.xlu0 %387
    %389 = vrot.lane.b32.xlu0 %v142, 72
    %v390 = vpop.permute.xlu0 %389
    %v391 = vsel %vm153, %v388, 0
    %v393 = vsel %vm153, %v390, 0
    %395 = vmatprep.subr.mxu0 0.0
    %396 = vmatpush1.xpose.msra.mxu0 0.0
    %397 = vmatprep.subr.mxu0 0.0
    %398 = vmatpush1.xpose.msra.mxu0 0.0
    %399 = vmatprep.subr.mxu0 0.0
    %400 = vmatpush1.xpose.msra.mxu0 0.0
    %401 = vmatprep.subr.mxu0 0.0
    %402 = vmatpush1.xpose.msra.mxu0 0.0
    %403 = vmatprep.subr.mxu0 0.0
    %404 = vmatpush1.xpose.msra.mxu0 0.0
    %405 = vmatprep.subr.mxu0 0.0
    %406 = vmatpush1.xpose.msra.mxu0 0.0
    %407 = vmatprep.subr.mxu0 0.0
    %408 = vmatpush1.xpose.msra.mxu0 0.0
    %409 = vmatprep.subr.mxu0 0.0
    %410 = vmatpush1.xpose.msra.mxu0 0.0
    %411 = vmatprep.subr.mxu0 0.0
    %412 = vmatpush1.xpose.msra.mxu0 0.0
    %413 = vmatprep.subr.mxu0 0.0
    %414 = vmatpush1.xpose.msra.mxu0 0.0
    %415 = vmatprep.subr.mxu0 0.0
    %416 = vmatpush1.xpose.msra.mxu0 0.0
    %417 = vmatprep.subr.mxu0 0.0
    %418 = vmatpush1.xpose.msra.mxu0 0.0
    %419 = vmatprep.subr.mxu0 0.0
    %420 = vmatpush1.xpose.msra.mxu0 0.0
    %421 = vmatprep.subr.mxu0 0.0
    %422 = vmatpush1.xpose.msra.mxu0 0.0
    %423 = vmatprep.subr.mxu0 0.0
    %424 = vmatpush1.xpose.msra.mxu0 0.0
    %425 = vmatprep.subr.mxu0 0.0
    %426 = vmatpush1.xpose.msra.mxu0 %v393
    %427 = vmatprep.subr.mxu0 0.0
    %428 = vmatpush2.xpose.msra.mxu0 0.0
    %429 = vmatprep.subr.mxu0 0.0
    %430 = vmatpush2.xpose.msra.mxu0 0.0
    %431 = vmatprep.subr.mxu0 0.0
    %432 = vmatpush2.xpose.msra.mxu0 0.0
    %433 = vmatprep.subr.mxu0 0.0
    %434 = vmatpush2.xpose.msra.mxu0 0.0
    %435 = vmatprep.subr.mxu0 0.0
    %436 = vmatpush2.xpose.msra.mxu0 0.0
    %437 = vmatprep.subr.mxu0 0.0
    %438 = vmatpush2.xpose.msra.mxu0 0.0
    %439 = vmatprep.subr.mxu0 0.0
    %440 = vmatpush2.xpose.msra.mxu0 0.0
    %441 = vmatprep.subr.mxu0 0.0
    %442 = vmatpush2.xpose.msra.mxu0 0.0
    %443 = vmatprep.subr.mxu0 0.0
    %444 = vmatpush2.xpose.msra.mxu0 0.0
    %445 = vmatprep.subr.mxu0 0.0
    %446 = vmatpush2.xpose.msra.mxu0 0.0
    %447 = vmatprep.subr.mxu0 0.0
    %448 = vmatpush2.xpose.msra.mxu0 0.0
    %449 = vmatprep.subr.mxu0 0.0
    %450 = vmatpush2.xpose.msra.mxu0 0.0
    %451 = vmatprep.subr.mxu0 0.0
    %452 = vmatpush2.xpose.msra.mxu0 0.0
    %453 = vmatprep.subr.mxu0 0.0
    %454 = vmatpush2.xpose.msra.mxu0 0.0
    %455 = vmatprep.subr.mxu0 0.0
    %456 = vmatpush2.xpose.msra.mxu0 0.0
    %457 = vmatprep.subr.mxu0 0.0
    %458 = vmatpush2.xpose.msra.mxu0 0.0
    %459 = vmatprep.mubr.f32.mxu0 0.0
    %460 = vmatmul.mubr.f32.gmra.mxu0 %v391
    %v461 = vpop.f32.mrf.mxu0
    %v462 = vadd.f32 0.0, %v461
    %v463 = vpop.f32.mrf.mxu0
    %464 = vdwg.mxu0
    %v465 = vmul.f32 %v462, 0.35355338
    %467 = vrot.lane.b32.xlu0 %v147, 96
    %v468 = vpop.permute.xlu0 %467
    %v469 = vsel %vm153, %v147, 0
    %v471 = vsel %vm153, %v468, 0
    %473 = vmatprep.subr.mxu0 0.0
    %474 = vmatpush1.xpose.msra.mxu0 0.0
    %475 = vmatprep.subr.mxu0 0.0
    %476 = vmatpush1.xpose.msra.mxu0 0.0
    %477 = vmatprep.subr.mxu0 0.0
    %478 = vmatpush1.xpose.msra.mxu0 0.0
    %479 = vmatprep.subr.mxu0 0.0
    %480 = vmatpush1.xpose.msra.mxu0 0.0
    %481 = vmatprep.subr.mxu0 0.0
    %482 = vmatpush1.xpose.msra.mxu0 0.0
    %483 = vmatprep.subr.mxu0 0.0
    %484 = vmatpush1.xpose.msra.mxu0 0.0
    %485 = vmatprep.subr.mxu0 0.0
    %486 = vmatpush1.xpose.msra.mxu0 0.0
    %487 = vmatprep.subr.mxu0 0.0
    %488 = vmatpush1.xpose.msra.mxu0 0.0
    %489 = vmatprep.subr.mxu0 0.0
    %490 = vmatpush1.xpose.msra.mxu0 0.0
    %491 = vmatprep.subr.mxu0 0.0
    %492 = vmatpush1.xpose.msra.mxu0 0.0
    %493 = vmatprep.subr.mxu0 0.0
    %494 = vmatpush1.xpose.msra.mxu0 0.0
    %495 = vmatprep.subr.mxu0 0.0
    %496 = vmatpush1.xpose.msra.mxu0 0.0
    %497 = vmatprep.subr.mxu0 0.0
    %498 = vmatpush1.xpose.msra.mxu0 0.0
    %499 = vmatprep.subr.mxu0 0.0
    %500 = vmatpush1.xpose.msra.mxu0 0.0
    %501 = vmatprep.subr.mxu0 0.0
    %502 = vmatpush1.xpose.msra.mxu0 0.0
    %503 = vmatprep.subr.mxu0 0.0
    %504 = vmatpush1.xpose.msra.mxu0 %v471
    %505 = vmatprep.subr.mxu0 0.0
    %506 = vmatpush2.xpose.msra.mxu0 0.0
    %507 = vmatprep.subr.mxu0 0.0
    %508 = vmatpush2.xpose.msra.mxu0 0.0
    %509 = vmatprep.subr.mxu0 0.0
    %510 = vmatpush2.xpose.msra.mxu0 0.0
    %511 = vmatprep.subr.mxu0 0.0
    %512 = vmatpush2.xpose.msra.mxu0 0.0
    %513 = vmatprep.subr.mxu0 0.0
    %514 = vmatpush2.xpose.msra.mxu0 0.0
    %515 = vmatprep.subr.mxu0 0.0
    %516 = vmatpush2.xpose.msra.mxu0 0.0
    %517 = vmatprep.subr.mxu0 0.0
    %518 = vmatpush2.xpose.msra.mxu0 0.0
    %519 = vmatprep.subr.mxu0 0.0
    %520 = vmatpush2.xpose.msra.mxu0 0.0
    %521 = vmatprep.subr.mxu0 0.0
    %522 = vmatpush2.xpose.msra.mxu0 0.0
    %523 = vmatprep.subr.mxu0 0.0
    %524 = vmatpush2.xpose.msra.mxu0 0.0
    %525 = vmatprep.subr.mxu0 0.0
    %526 = vmatpush2.xpose.msra.mxu0 0.0
    %527 = vmatprep.subr.mxu0 0.0
    %528 = vmatpush2.xpose.msra.mxu0 0.0
    %529 = vmatprep.subr.mxu0 0.0
    %530 = vmatpush2.xpose.msra.mxu0 0.0
    %531 = vmatprep.subr.mxu0 0.0
    %532 = vmatpush2.xpose.msra.mxu0 0.0
    %533 = vmatprep.subr.mxu0 0.0
    %534 = vmatpush2.xpose.msra.mxu0 0.0
    %535 = vmatprep.subr.mxu0 0.0
    %536 = vmatpush2.xpose.msra.mxu0 0.0
    %537 = vmatprep.mubr.f32.mxu0 0.0
    %538 = vmatmul.mubr.f32.gmra.mxu0 %v469
    %v539 = vpop.f32.mrf.mxu0
    %v540 = vadd.f32 0.0, %v539
    %v541 = vpop.f32.mrf.mxu0
    %542 = vdwg.mxu0
    %v543 = vmul.f32 %v540, 0.35355338
    %544 = vrot.lane.b32.xlu0 %v147, 120
    %v545 = vpop.permute.xlu0 %544
    %546 = vrot.lane.b32.xlu0 %v147, 88
    %v547 = vpop.permute.xlu0 %546
    %v548 = vsel %vm153, %v545, 0
    %v550 = vsel %vm153, %v547, 0
    %552 = vmatprep.subr.mxu0 0.0
    %553 = vmatpush1.xpose.msra.mxu0 0.0
    %554 = vmatprep.subr.mxu0 0.0
    %555 = vmatpush1.xpose.msra.mxu0 0.0
    %556 = vmatprep.subr.mxu0 0.0
    %557 = vmatpush1.xpose.msra.mxu0 0.0
    %558 = vmatprep.subr.mxu0 0.0
    %559 = vmatpush1.xpose.msra.mxu0 0.0
    %560 = vmatprep.subr.mxu0 0.0
    %561 = vmatpush1.xpose.msra.mxu0 0.0
    %562 = vmatprep.subr.mxu0 0.0
    %563 = vmatpush1.xpose.msra.mxu0 0.0
    %564 = vmatprep.subr.mxu0 0.0
    %565 = vmatpush1.xpose.msra.mxu0 0.0
    %566 = vmatprep.subr.mxu0 0.0
    %567 = vmatpush1.xpose.msra.mxu0 0.0
    %568 = vmatprep.subr.mxu0 0.0
    %569 = vmatpush1.xpose.msra.mxu0 0.0
    %570 = vmatprep.subr.mxu0 0.0
    %571 = vmatpush1.xpose.msra.mxu0 0.0
    %572 = vmatprep.subr.mxu0 0.0
    %573 = vmatpush1.xpose.msra.mxu0 0.0
    %574 = vmatprep.subr.mxu0 0.0
    %575 = vmatpush1.xpose.msra.mxu0 0.0
    %576 = vmatprep.subr.mxu0 0.0
    %577 = vmatpush1.xpose.msra.mxu0 0.0
    %578 = vmatprep.subr.mxu0 0.0
    %579 = vmatpush1.xpose.msra.mxu0 0.0
    %580 = vmatprep.subr.mxu0 0.0
    %581 = vmatpush1.xpose.msra.mxu0 0.0
    %582 = vmatprep.subr.mxu0 0.0
    %583 = vmatpush1.xpose.msra.mxu0 %v550
    %584 = vmatprep.subr.mxu0 0.0
    %585 = vmatpush2.xpose.msra.mxu0 0.0
    %586 = vmatprep.subr.mxu0 0.0
    %587 = vmatpush2.xpose.msra.mxu0 0.0
    %588 = vmatprep.subr.mxu0 0.0
    %589 = vmatpush2.xpose.msra.mxu0 0.0
    %590 = vmatprep.subr.mxu0 0.0
    %591 = vmatpush2.xpose.msra.mxu0 0.0
    %592 = vmatprep.subr.mxu0 0.0
    %593 = vmatpush2.xpose.msra.mxu0 0.0
    %594 = vmatprep.subr.mxu0 0.0
    %595 = vmatpush2.xpose.msra.mxu0 0.0
    %596 = vmatprep.subr.mxu0 0.0
    %597 = vmatpush2.xpose.msra.mxu0 0.0
    %598 = vmatprep.subr.mxu0 0.0
    %599 = vmatpush2.xpose.msra.mxu0 0.0
    %600 = vmatprep.subr.mxu0 0.0
    %601 = vmatpush2.xpose.msra.mxu0 0.0
    %602 = vmatprep.subr.mxu0 0.0
    %603 = vmatpush2.xpose.msra.mxu0 0.0
    %604 = vmatprep.subr.mxu0 0.0
    %605 = vmatpush2.xpose.msra.mxu0 0.0
    %606 = vmatprep.subr.mxu0 0.0
    %607 = vmatpush2.xpose.msra.mxu0 0.0
    %608 = vmatprep.subr.mxu0 0.0
    %609 = vmatpush2.xpose.msra.mxu0 0.0
    %610 = vmatprep.subr.mxu0 0.0
    %611 = vmatpush2.xpose.msra.mxu0 0.0
    %612 = vmatprep.subr.mxu0 0.0
    %613 = vmatpush2.xpose.msra.mxu0 0.0
    %614 = vmatprep.subr.mxu0 0.0
    %615 = vmatpush2.xpose.msra.mxu0 0.0
    %616 = vmatprep.mubr.f32.mxu0 0.0
    %617 = vmatmul.mubr.f32.gmra.mxu0 %v548
    %v618 = vpop.f32.mrf.mxu0
    %v619 = vadd.f32 0.0, %v618
    %v620 = vpop.f32.mrf.mxu0
    %621 = vdwg.mxu0
    %v622 = vmul.f32 %v619, 0.35355338
    %623 = vrot.lane.b32.xlu0 %v147, 112
    %v624 = vpop.permute.xlu0 %623
    %625 = vrot.lane.b32.xlu0 %v147, 80
    %v626 = vpop.permute.xlu0 %625
    %v627 = vsel %vm153, %v624, 0
    %v629 = vsel %vm153, %v626, 0
    %631 = vmatprep.subr.mxu0 0.0
    %632 = vmatpush1.xpose.msra.mxu0 0.0
    %633 = vmatprep.subr.mxu0 0.0
    %634 = vmatpush1.xpose.msra.mxu0 0.0
    %635 = vmatprep.subr.mxu0 0.0
    %636 = vmatpush1.xpose.msra.mxu0 0.0
    %637 = vmatprep.subr.mxu0 0.0
    %638 = vmatpush1.xpose.msra.mxu0 0.0
    %639 = vmatprep.subr.mxu0 0.0
    %640 = vmatpush1.xpose.msra.mxu0 0.0
    %641 = vmatprep.subr.mxu0 0.0
    %642 = vmatpush1.xpose.msra.mxu0 0.0
    %643 = vmatprep.subr.mxu0 0.0
    %644 = vmatpush1.xpose.msra.mxu0 0.0
    %645 = vmatprep.subr.mxu0 0.0
    %646 = vmatpush1.xpose.msra.mxu0 0.0
    %647 = vmatprep.subr.mxu0 0.0
    %648 = vmatpush1.xpose.msra.mxu0 0.0
    %649 = vmatprep.subr.mxu0 0.0
    %650 = vmatpush1.xpose.msra.mxu0 0.0
    %651 = vmatprep.subr.mxu0 0.0
    %652 = vmatpush1.xpose.msra.mxu0 0.0
    %653 = vmatprep.subr.mxu0 0.0
    %654 = vmatpush1.xpose.msra.mxu0 0.0
    %655 = vmatprep.subr.mxu0 0.0
    %656 = vmatpush1.xpose.msra.mxu0 0.0
    %657 = vmatprep.subr.mxu0 0.0
    %658 = vmatpush1.xpose.msra.mxu0 0.0
    %659 = vmatprep.subr.mxu0 0.0
    %660 = vmatpush1.xpose.msra.mxu0 0.0
    %661 = vmatprep.subr.mxu0 0.0
    %662 = vmatpush1.xpose.msra.mxu0 %v629
    %663 = vmatprep.subr.mxu0 0.0
    %664 = vmatpush2.xpose.msra.mxu0 0.0
    %665 = vmatprep.subr.mxu0 0.0
    %666 = vmatpush2.xpose.msra.mxu0 0.0
    %667 = vmatprep.subr.mxu0 0.0
    %668 = vmatpush2.xpose.msra.mxu0 0.0
    %669 = vmatprep.subr.mxu0 0.0
    %670 = vmatpush2.xpose.msra.mxu0 0.0
    %671 = vmatprep.subr.mxu0 0.0
    %672 = vmatpush2.xpose.msra.mxu0 0.0
    %673 = vmatprep.subr.mxu0 0.0
    %674 = vmatpush2.xpose.msra.mxu0 0.0
    %675 = vmatprep.subr.mxu0 0.0
    %676 = vmatpush2.xpose.msra.mxu0 0.0
    %677 = vmatprep.subr.mxu0 0.0
    %678 = vmatpush2.xpose.msra.mxu0 0.0
    %679 = vmatprep.subr.mxu0 0.0
    %680 = vmatpush2.xpose.msra.mxu0 0.0
    %681 = vmatprep.subr.mxu0 0.0
    %682 = vmatpush2.xpose.msra.mxu0 0.0
    %683 = vmatprep.subr.mxu0 0.0
    %684 = vmatpush2.xpose.msra.mxu0 0.0
    %685 = vmatprep.subr.mxu0 0.0
    %686 = vmatpush2.xpose.msra.mxu0 0.0
    %687 = vmatprep.subr.mxu0 0.0
    %688 = vmatpush2.xpose.msra.mxu0 0.0
    %689 = vmatprep.subr.mxu0 0.0
    %690 = vmatpush2.xpose.msra.mxu0 0.0
    %691 = vmatprep.subr.mxu0 0.0
    %692 = vmatpush2.xpose.msra.mxu0 0.0
    %693 = vmatprep.subr.mxu0 0.0
    %694 = vmatpush2.xpose.msra.mxu0 0.0
    %695 = vmatprep.mubr.f32.mxu0 0.0
    %696 = vmatmul.mubr.f32.gmra.mxu0 %v627
    %v697 = vpop.f32.mrf.mxu0
    %v698 = vadd.f32 0.0, %v697
    %v699 = vpop.f32.mrf.mxu0
    %700 = vdwg.mxu0
    %v701 = vmul.f32 %v698, 0.35355338
    %702 = vrot.lane.b32.xlu0 %v147, 104
    %v703 = vpop.permute.xlu0 %702
    %704 = vrot.lane.b32.xlu0 %v147, 72
    %v705 = vpop.permute.xlu0 %704
    %v706 = vsel %vm153, %v703, 0
    %v708 = vsel %vm153, %v705, 0
    %710 = vmatprep.subr.mxu0 0.0
    %711 = vmatpush1.xpose.msra.mxu0 0.0
    %712 = vmatprep.subr.mxu0 0.0
    %713 = vmatpush1.xpose.msra.mxu0 0.0
    %714 = vmatprep.subr.mxu0 0.0
    %715 = vmatpush1.xpose.msra.mxu0 0.0
    %716 = vmatprep.subr.mxu0 0.0
    %717 = vmatpush1.xpose.msra.mxu0 0.0
    %718 = vmatprep.subr.mxu0 0.0
    %719 = vmatpush1.xpose.msra.mxu0 0.0
    %720 = vmatprep.subr.mxu0 0.0
    %721 = vmatpush1.xpose.msra.mxu0 0.0
    %722 = vmatprep.subr.mxu0 0.0
    %723 = vmatpush1.xpose.msra.mxu0 0.0
    %724 = vmatprep.subr.mxu0 0.0
    %725 = vmatpush1.xpose.msra.mxu0 0.0
    %726 = vmatprep.subr.mxu0 0.0
    %727 = vmatpush1.xpose.msra.mxu0 0.0
    %728 = vmatprep.subr.mxu0 0.0
    %729 = vmatpush1.xpose.msra.mxu0 0.0
    %730 = vmatprep.subr.mxu0 0.0
    %731 = vmatpush1.xpose.msra.mxu0 0.0
    %732 = vmatprep.subr.mxu0 0.0
    %733 = vmatpush1.xpose.msra.mxu0 0.0
    %734 = vmatprep.subr.mxu0 0.0
    %735 = vmatpush1.xpose.msra.mxu0 0.0
    %736 = vmatprep.subr.mxu0 0.0
    %737 = vmatpush1.xpose.msra.mxu0 0.0
    %738 = vmatprep.subr.mxu0 0.0
    %739 = vmatpush1.xpose.msra.mxu0 0.0
    %740 = vmatprep.subr.mxu0 0.0
    %741 = vmatpush1.xpose.msra.mxu0 %v708
    %742 = vmatprep.subr.mxu0 0.0
    %743 = vmatpush2.xpose.msra.mxu0 0.0
    %744 = vmatprep.subr.mxu0 0.0
    %745 = vmatpush2.xpose.msra.mxu0 0.0
    %746 = vmatprep.subr.mxu0 0.0
    %747 = vmatpush2.xpose.msra.mxu0 0.0
    %748 = vmatprep.subr.mxu0 0.0
    %749 = vmatpush2.xpose.msra.mxu0 0.0
    %750 = vmatprep.subr.mxu0 0.0
    %751 = vmatpush2.xpose.msra.mxu0 0.0
    %752 = vmatprep.subr.mxu0 0.0
    %753 = vmatpush2.xpose.msra.mxu0 0.0
    %754 = vmatprep.subr.mxu0 0.0
    %755 = vmatpush2.xpose.msra.mxu0 0.0
    %756 = vmatprep.subr.mxu0 0.0
    %757 = vmatpush2.xpose.msra.mxu0 0.0
    %758 = vmatprep.subr.mxu0 0.0
    %759 = vmatpush2.xpose.msra.mxu0 0.0
    %760 = vmatprep.subr.mxu0 0.0
    %761 = vmatpush2.xpose.msra.mxu0 0.0
    %762 = vmatprep.subr.mxu0 0.0
    %763 = vmatpush2.xpose.msra.mxu0 0.0
    %764 = vmatprep.subr.mxu0 0.0
    %765 = vmatpush2.xpose.msra.mxu0 0.0
    %766 = vmatprep.subr.mxu0 0.0
    %767 = vmatpush2.xpose.msra.mxu0 0.0
    %768 = vmatprep.subr.mxu0 0.0
    %769 = vmatpush2.xpose.msra.mxu0 0.0
    %770 = vmatprep.subr.mxu0 0.0
    %771 = vmatpush2.xpose.msra.mxu0 0.0
    %772 = vmatprep.subr.mxu0 0.0
    %773 = vmatpush2.xpose.msra.mxu0 0.0
    %774 = vmatprep.mubr.f32.mxu0 0.0
    %775 = vmatmul.mubr.f32.gmra.mxu0 %v706
    %v776 = vpop.f32.mrf.mxu0
    %v777 = vadd.f32 0.0, %v776
    %v778 = vpop.f32.mrf.mxu0
    %779 = vdwg.mxu0
    %v780 = vmul.f32 %v777, 0.35355338
    %v781 = vsel %vm153, %v228, -inf
    %782 = vmax.xlane.f32.xlu0 %v781
    %v783 = vpop.xlane.xlu0 %782
    %v784 = vsel %vm153, %v307, -inf
    %785 = vmax.xlane.f32.xlu0 %v784
    %v786 = vpop.xlane.xlu0 %785
    %v787 = vsel %vm153, %v386, -inf
    %788 = vmax.xlane.f32.xlu0 %v787
    %v789 = vpop.xlane.xlu0 %788
    %v790 = vsel %vm153, %v465, -inf
    %791 = vmax.xlane.f32.xlu0 %v790
    %v792 = vpop.xlane.xlu0 %791
    %v793 = vsel %vm153, %v543, -inf
    %794 = vmax.xlane.f32.xlu0 %v793
    %v795 = vpop.xlane.xlu0 %794
    %v796 = vsel %vm153, %v622, -inf
    %797 = vmax.xlane.f32.xlu0 %v796
    %v798 = vpop.xlane.xlu0 %797
    %v799 = vsel %vm153, %v701, -inf
    %800 = vmax.xlane.f32.xlu0 %v799
    %v801 = vpop.xlane.xlu0 %800
    %v802 = vsel %vm153, %v780, -inf
    %803 = vmax.xlane.f32.xlu0 %v802
    %v804 = vpop.xlane.xlu0 %803
    %v805 = vsub.f32 %v228, %v783
    %v806 = vsub.f32 %v307, %v786
    %v807 = vsub.f32 %v386, %v789
    %v808 = vsub.f32 %v465, %v792
    %v809 = vsub.f32 %v543, %v795
    %v810 = vsub.f32 %v622, %v798
    %v811 = vsub.f32 %v701, %v801
    %v812 = vsub.f32 %v780, %v804
    %v813 = vmul.f32 %v805, 1.442695
    %v814 = vpow.pop %v813
    %v815 = vmul.f32 %v806, 1.442695
    %v816 = vpow.pop %v815
    %v817 = vmul.f32 %v807, 1.442695
    %v818 = vpow.pop %v817
    %v819 = vmul.f32 %v808, 1.442695
    %v820 = vpow.pop %v819
    %v821 = vmul.f32 %v809, 1.442695
    %v822 = vpow.pop %v821
    %v823 = vmul.f32 %v810, 1.442695
    %v824 = vpow.pop %v823
    %v825 = vmul.f32 %v811, 1.442695
    %v826 = vpow.pop %v825
    %v827 = vmul.f32 %v812, 1.442695
    %v828 = vpow.pop %v827
    %v829 = vsel %vm153, %v814, 0.0
    %830 = vadd.xlane.f32.xlu0 %v829
    %v831 = vpop.xlane.xlu0 %830
    %v832 = vsel %vm153, %v816, 0.0
    %833 = vadd.xlane.f32.xlu0 %v832
    %v834 = vpop.xlane.xlu0 %833
    %v835 = vsel %vm153, %v818, 0.0
    %836 = vadd.xlane.f32.xlu0 %v835
    %v837 = vpop.xlane.xlu0 %836
    %v838 = vsel %vm153, %v820, 0.0
    %839 = vadd.xlane.f32.xlu0 %v838
    %v840 = vpop.xlane.xlu0 %839
    %v841 = vsel %vm153, %v822, 0.0
    %842 = vadd.xlane.f32.xlu0 %v841
    %v843 = vpop.xlane.xlu0 %842
    %v844 = vsel %vm153, %v824, 0.0
    %845 = vadd.xlane.f32.xlu0 %v844
    %v846 = vpop.xlane.xlu0 %845
    %v847 = vsel %vm153, %v826, 0.0
    %848 = vadd.xlane.f32.xlu0 %v847
    %v849 = vpop.xlane.xlu0 %848
    %v850 = vsel %vm153, %v828, 0.0
    %851 = vadd.xlane.f32.xlu0 %v850
    %v852 = vpop.xlane.xlu0 %851
    %v853 = vrcp.pop %v831
    %v854 = vrcp.pop %v834
    %v855 = vrcp.pop %v837
    %v856 = vrcp.pop %v840
    %v857 = vrcp.pop %v843
    %v858 = vrcp.pop %v846
    %v859 = vrcp.pop %v849
    %v860 = vrcp.pop %v852
    %v861 = vmul.f32 %v814, %v853
    %v862 = vmul.f32 %v816, %v854
    %v863 = vmul.f32 %v818, %v855
    %v864 = vmul.f32 %v820, %v856
    %v865 = vmul.f32 %v822, %v857
    %v866 = vmul.f32 %v824, %v858
    %v867 = vmul.f32 %v826, %v859
    %v868 = vmul.f32 %v828, %v860
    %v869 = vld [vmem:[%s2 + $0x80] sm:$0xff]
    %v870 = vld [vmem:[%s2 + $0x88] sm:$0xff]
    %v871 = vld [vmem:[%s2 + $0x90] sm:$0xff]
    %v872 = vld [vmem:[%s2 + $0x98] sm:$0xff]
    %873 = vrot.lane.b32.xlu0 %v142, 64
    %v874 = vpop.permute.xlu0 %873
    %v877 = vsel %vm153, %v861, 0
    %879 = vmatprep.subr.mxu0 0.0
    %880 = vmatpush1.msra.mxu0 0.0
    %881 = vmatprep.subr.mxu0 0.0
    %882 = vmatpush1.msra.mxu0 0.0
    %883 = vmatprep.subr.mxu0 0.0
    %884 = vmatpush1.msra.mxu0 0.0
    %885 = vmatprep.subr.mxu0 0.0
    %886 = vmatpush1.msra.mxu0 0.0
    %887 = vmatprep.subr.mxu0 0.0
    %888 = vmatpush1.msra.mxu0 0.0
    %889 = vmatprep.subr.mxu0 0.0
    %890 = vmatpush1.msra.mxu0 0.0
    %891 = vmatprep.subr.mxu0 0.0
    %892 = vmatpush1.msra.mxu0 0.0
    %893 = vmatprep.subr.mxu0 0.0
    %894 = vmatpush1.msra.mxu0 0.0
    %895 = vmatprep.subr.mxu0 0.0
    %896 = vmatpush1.msra.mxu0 0.0
    %897 = vmatprep.subr.mxu0 0.0
    %898 = vmatpush1.msra.mxu0 0.0
    %899 = vmatprep.subr.mxu0 0.0
    %900 = vmatpush1.msra.mxu0 0.0
    %901 = vmatprep.subr.mxu0 0.0
    %902 = vmatpush1.msra.mxu0 0.0
    %903 = vmatprep.subr.mxu0 0.0
    %904 = vmatpush1.msra.mxu0 0.0
    %905 = vmatprep.subr.mxu0 0.0
    %906 = vmatpush1.msra.mxu0 0.0
    %907 = vmatprep.subr.mxu0 0.0
    %908 = vmatpush1.msra.mxu0 0.0
    %909 = vmatprep.subr.mxu0 0.0
    %910 = vmatpush1.msra.mxu0 %v874
    %911 = vmatprep.subr.mxu0 0.0
    %912 = vmatpush2.msra.mxu0 0.0
    %913 = vmatprep.subr.mxu0 0.0
    %914 = vmatpush2.msra.mxu0 0.0
    %915 = vmatprep.subr.mxu0 0.0
    %916 = vmatpush2.msra.mxu0 0.0
    %917 = vmatprep.subr.mxu0 0.0
    %918 = vmatpush2.msra.mxu0 0.0
    %919 = vmatprep.subr.mxu0 0.0
    %920 = vmatpush2.msra.mxu0 0.0
    %921 = vmatprep.subr.mxu0 0.0
    %922 = vmatpush2.msra.mxu0 0.0
    %923 = vmatprep.subr.mxu0 0.0
    %924 = vmatpush2.msra.mxu0 0.0
    %925 = vmatprep.subr.mxu0 0.0
    %926 = vmatpush2.msra.mxu0 0.0
    %927 = vmatprep.subr.mxu0 0.0
    %928 = vmatpush2.msra.mxu0 0.0
    %929 = vmatprep.subr.mxu0 0.0
    %930 = vmatpush2.msra.mxu0 0.0
    %931 = vmatprep.subr.mxu0 0.0
    %932 = vmatpush2.msra.mxu0 0.0
    %933 = vmatprep.subr.mxu0 0.0
    %934 = vmatpush2.msra.mxu0 0.0
    %935 = vmatprep.subr.mxu0 0.0
    %936 = vmatpush2.msra.mxu0 0.0
    %937 = vmatprep.subr.mxu0 0.0
    %938 = vmatpush2.msra.mxu0 0.0
    %939 = vmatprep.subr.mxu0 0.0
    %940 = vmatpush2.msra.mxu0 0.0
    %941 = vmatprep.subr.mxu0 0.0
    %942 = vmatpush2.msra.mxu0 0.0
    %943 = vmatprep.mubr.f32.mxu0 0.0
    %944 = vmatmul.mubr.f32.gmra.mxu0 %v877
    %v945 = vpop.f32.mrf.mxu0
    %v946 = vadd.f32 0.0, %v945
    %v947 = vpop.f32.mrf.mxu0
    %948 = vdwg.mxu0
    %949 = vrot.lane.b32.xlu0 %v142, 56
    %v950 = vpop.permute.xlu0 %949
    %v953 = vsel %vm153, %v862, 0
    %955 = vmatprep.subr.mxu0 0.0
    %956 = vmatpush1.msra.mxu0 0.0
    %957 = vmatprep.subr.mxu0 0.0
    %958 = vmatpush1.msra.mxu0 0.0
    %959 = vmatprep.subr.mxu0 0.0
    %960 = vmatpush1.msra.mxu0 0.0
    %961 = vmatprep.subr.mxu0 0.0
    %962 = vmatpush1.msra.mxu0 0.0
    %963 = vmatprep.subr.mxu0 0.0
    %964 = vmatpush1.msra.mxu0 0.0
    %965 = vmatprep.subr.mxu0 0.0
    %966 = vmatpush1.msra.mxu0 0.0
    %967 = vmatprep.subr.mxu0 0.0
    %968 = vmatpush1.msra.mxu0 0.0
    %969 = vmatprep.subr.mxu0 0.0
    %970 = vmatpush1.msra.mxu0 0.0
    %971 = vmatprep.subr.mxu0 0.0
    %972 = vmatpush1.msra.mxu0 0.0
    %973 = vmatprep.subr.mxu0 0.0
    %974 = vmatpush1.msra.mxu0 0.0
    %975 = vmatprep.subr.mxu0 0.0
    %976 = vmatpush1.msra.mxu0 0.0
    %977 = vmatprep.subr.mxu0 0.0
    %978 = vmatpush1.msra.mxu0 0.0
    %979 = vmatprep.subr.mxu0 0.0
    %980 = vmatpush1.msra.mxu0 0.0
    %981 = vmatprep.subr.mxu0 0.0
    %982 = vmatpush1.msra.mxu0 0.0
    %983 = vmatprep.subr.mxu0 0.0
    %984 = vmatpush1.msra.mxu0 0.0
    %985 = vmatprep.subr.mxu0 0.0
    %986 = vmatpush1.msra.mxu0 %v950
    %987 = vmatprep.subr.mxu0 0.0
    %988 = vmatpush2.msra.mxu0 0.0
    %989 = vmatprep.subr.mxu0 0.0
    %990 = vmatpush2.msra.mxu0 0.0
    %991 = vmatprep.subr.mxu0 0.0
    %992 = vmatpush2.msra.mxu0 0.0
    %993 = vmatprep.subr.mxu0 0.0
    %994 = vmatpush2.msra.mxu0 0.0
    %995 = vmatprep.subr.mxu0 0.0
    %996 = vmatpush2.msra.mxu0 0.0
    %997 = vmatprep.subr.mxu0 0.0
    %998 = vmatpush2.msra.mxu0 0.0
    %999 = vmatprep.subr.mxu0 0.0
    %1000 = vmatpush2.msra.mxu0 0.0
    %1001 = vmatprep.subr.mxu0 0.0
    %1002 = vmatpush2.msra.mxu0 0.0
    %1003 = vmatprep.subr.mxu0 0.0
    %1004 = vmatpush2.msra.mxu0 0.0
    %1005 = vmatprep.subr.mxu0 0.0
    %1006 = vmatpush2.msra.mxu0 0.0
    %1007 = vmatprep.subr.mxu0 0.0
    %1008 = vmatpush2.msra.mxu0 0.0
    %1009 = vmatprep.subr.mxu0 0.0
    %1010 = vmatpush2.msra.mxu0 0.0
    %1011 = vmatprep.subr.mxu0 0.0
    %1012 = vmatpush2.msra.mxu0 0.0
    %1013 = vmatprep.subr.mxu0 0.0
    %1014 = vmatpush2.msra.mxu0 0.0
    %1015 = vmatprep.subr.mxu0 0.0
    %1016 = vmatpush2.msra.mxu0 0.0
    %1017 = vmatprep.subr.mxu0 0.0
    %1018 = vmatpush2.msra.mxu0 0.0
    %1019 = vmatprep.mubr.f32.mxu0 0.0
    %1020 = vmatmul.mubr.f32.gmra.mxu0 %v953
    %v1021 = vpop.f32.mrf.mxu0
    %v1022 = vadd.f32 0.0, %v1021
    %v1023 = vpop.f32.mrf.mxu0
    %1024 = vdwg.mxu0
    %v1026 = vsel %vm153, %v1022, 0
    %1028 = vmatprep.subr.mxu0 0.0
    %1029 = vmatpush1.msra.mxu0 0.0
    %1030 = vmatprep.subr.mxu0 0.0
    %1031 = vmatpush1.msra.mxu0 0.0
    %1032 = vmatprep.subr.mxu0 0.0
    %1033 = vmatpush1.msra.mxu0 0.0
    %1034 = vmatprep.subr.mxu0 0.0
    %1035 = vmatpush1.msra.mxu0 0.0
    %1036 = vmatprep.subr.mxu0 0.0
    %1037 = vmatpush1.msra.mxu0 0.0
    %1038 = vmatprep.subr.mxu0 0.0
    %1039 = vmatpush1.msra.mxu0 0.0
    %1040 = vmatprep.subr.mxu0 0.0
    %1041 = vmatpush1.msra.mxu0 0.0
    %1042 = vmatprep.subr.mxu0 0.0
    %1043 = vmatpush1.msra.mxu0 0.0
    %1044 = vmatprep.subr.mxu0 0.0
    %1045 = vmatpush1.msra.mxu0 0.0
    %1046 = vmatprep.subr.mxu0 0.0
    %1047 = vmatpush1.msra.mxu0 0.0
    %1048 = vmatprep.subr.mxu0 0.0
    %1049 = vmatpush1.msra.mxu0 0.0
    %1050 = vmatprep.subr.mxu0 0.0
    %1051 = vmatpush1.msra.mxu0 0.0
    %1052 = vmatprep.subr.mxu0 0.0
    %1053 = vmatpush1.msra.mxu0 0.0
    %1054 = vmatprep.subr.mxu0 0.0
    %1055 = vmatpush1.msra.mxu0 0.0
    %1056 = vmatprep.subr.mxu0 0.0
    %1057 = vmatpush1.msra.mxu0 0.0
    %1058 = vmatprep.subr.mxu0 0.0
    %1059 = vmatpush1.msra.mxu0 %v870
    %1060 = vmatprep.subr.mxu0 0.0
    %1061 = vmatpush2.msra.mxu0 0.0
    %1062 = vmatprep.subr.mxu0 0.0
    %1063 = vmatpush2.msra.mxu0 0.0
    %1064 = vmatprep.subr.mxu0 0.0
    %1065 = vmatpush2.msra.mxu0 0.0
    %1066 = vmatprep.subr.mxu0 0.0
    %1067 = vmatpush2.msra.mxu0 0.0
    %1068 = vmatprep.subr.mxu0 0.0
    %1069 = vmatpush2.msra.mxu0 0.0
    %1070 = vmatprep.subr.mxu0 0.0
    %1071 = vmatpush2.msra.mxu0 0.0
    %1072 = vmatprep.subr.mxu0 0.0
    %1073 = vmatpush2.msra.mxu0 0.0
    %1074 = vmatprep.subr.mxu0 0.0
    %1075 = vmatpush2.msra.mxu0 0.0
    %1076 = vmatprep.subr.mxu0 0.0
    %1077 = vmatpush2.msra.mxu0 0.0
    %1078 = vmatprep.subr.mxu0 0.0
    %1079 = vmatpush2.msra.mxu0 0.0
    %1080 = vmatprep.subr.mxu0 0.0
    %1081 = vmatpush2.msra.mxu0 0.0
    %1082 = vmatprep.subr.mxu0 0.0
    %1083 = vmatpush2.msra.mxu0 0.0
    %1084 = vmatprep.subr.mxu0 0.0
    %1085 = vmatpush2.msra.mxu0 0.0
    %1086 = vmatprep.subr.mxu0 0.0
    %1087 = vmatpush2.msra.mxu0 0.0
    %1088 = vmatprep.subr.mxu0 0.0
    %1089 = vmatpush2.msra.mxu0 0.0
    %1090 = vmatprep.subr.mxu0 0.0
    %1091 = vmatpush2.msra.mxu0 0.0
    %1092 = vmatprep.mubr.f32.mxu0 0.0
    %1093 = vmatmul.mubr.f32.gmra.mxu0 %v1026
    %v1094 = vpop.f32.mrf.mxu0
    %v1095 = vadd.f32 0.0, %v1094
    %v1096 = vpop.f32.mrf.mxu0
    %1097 = vdwg.mxu0
    %v1099 = vsel %vm153, %v946, 0
    %1101 = vmatprep.subr.mxu0 0.0
    %1102 = vmatpush1.msra.mxu0 0.0
    %1103 = vmatprep.subr.mxu0 0.0
    %1104 = vmatpush1.msra.mxu0 0.0
    %1105 = vmatprep.subr.mxu0 0.0
    %1106 = vmatpush1.msra.mxu0 0.0
    %1107 = vmatprep.subr.mxu0 0.0
    %1108 = vmatpush1.msra.mxu0 0.0
    %1109 = vmatprep.subr.mxu0 0.0
    %1110 = vmatpush1.msra.mxu0 0.0
    %1111 = vmatprep.subr.mxu0 0.0
    %1112 = vmatpush1.msra.mxu0 0.0
    %1113 = vmatprep.subr.mxu0 0.0
    %1114 = vmatpush1.msra.mxu0 0.0
    %1115 = vmatprep.subr.mxu0 0.0
    %1116 = vmatpush1.msra.mxu0 0.0
    %1117 = vmatprep.subr.mxu0 0.0
    %1118 = vmatpush1.msra.mxu0 0.0
    %1119 = vmatprep.subr.mxu0 0.0
    %1120 = vmatpush1.msra.mxu0 0.0
    %1121 = vmatprep.subr.mxu0 0.0
    %1122 = vmatpush1.msra.mxu0 0.0
    %1123 = vmatprep.subr.mxu0 0.0
    %1124 = vmatpush1.msra.mxu0 0.0
    %1125 = vmatprep.subr.mxu0 0.0
    %1126 = vmatpush1.msra.mxu0 0.0
    %1127 = vmatprep.subr.mxu0 0.0
    %1128 = vmatpush1.msra.mxu0 0.0
    %1129 = vmatprep.subr.mxu0 0.0
    %1130 = vmatpush1.msra.mxu0 0.0
    %1131 = vmatprep.subr.mxu0 0.0
    %1132 = vmatpush1.msra.mxu0 %v869
    %1133 = vmatprep.subr.mxu0 0.0
    %1134 = vmatpush2.msra.mxu0 0.0
    %1135 = vmatprep.subr.mxu0 0.0
    %1136 = vmatpush2.msra.mxu0 0.0
    %1137 = vmatprep.subr.mxu0 0.0
    %1138 = vmatpush2.msra.mxu0 0.0
    %1139 = vmatprep.subr.mxu0 0.0
    %1140 = vmatpush2.msra.mxu0 0.0
    %1141 = vmatprep.subr.mxu0 0.0
    %1142 = vmatpush2.msra.mxu0 0.0
    %1143 = vmatprep.subr.mxu0 0.0
    %1144 = vmatpush2.msra.mxu0 0.0
    %1145 = vmatprep.subr.mxu0 0.0
    %1146 = vmatpush2.msra.mxu0 0.0
    %1147 = vmatprep.subr.mxu0 0.0
    %1148 = vmatpush2.msra.mxu0 0.0
    %1149 = vmatprep.subr.mxu0 0.0
    %1150 = vmatpush2.msra.mxu0 0.0
    %1151 = vmatprep.subr.mxu0 0.0
    %1152 = vmatpush2.msra.mxu0 0.0
    %1153 = vmatprep.subr.mxu0 0.0
    %1154 = vmatpush2.msra.mxu0 0.0
    %1155 = vmatprep.subr.mxu0 0.0
    %1156 = vmatpush2.msra.mxu0 0.0
    %1157 = vmatprep.subr.mxu0 0.0
    %1158 = vmatpush2.msra.mxu0 0.0
    %1159 = vmatprep.subr.mxu0 0.0
    %1160 = vmatpush2.msra.mxu0 0.0
    %1161 = vmatprep.subr.mxu0 0.0
    %1162 = vmatpush2.msra.mxu0 0.0
    %1163 = vmatprep.subr.mxu0 0.0
    %1164 = vmatpush2.msra.mxu0 0.0
    %1165 = vmatprep.mubr.f32.mxu0 0.0
    %1166 = vmatmul.mubr.f32.gmra.mxu0 %v1099
    %v1167 = vpop.f32.mrf.mxu0
    %v1168 = vadd.f32 %v1095, %v1167
    %v1169 = vpop.f32.mrf.mxu0
    %1170 = vdwg.mxu0
    %1171 = vrot.lane.b32.xlu0 %v142, 48
    %v1172 = vpop.permute.xlu0 %1171
    %v1175 = vsel %vm153, %v863, 0
    %1177 = vmatprep.subr.mxu0 0.0
    %1178 = vmatpush1.msra.mxu0 0.0
    %1179 = vmatprep.subr.mxu0 0.0
    %1180 = vmatpush1.msra.mxu0 0.0
    %1181 = vmatprep.subr.mxu0 0.0
    %1182 = vmatpush1.msra.mxu0 0.0
    %1183 = vmatprep.subr.mxu0 0.0
    %1184 = vmatpush1.msra.mxu0 0.0
    %1185 = vmatprep.subr.mxu0 0.0
    %1186 = vmatpush1.msra.mxu0 0.0
    %1187 = vmatprep.subr.mxu0 0.0
    %1188 = vmatpush1.msra.mxu0 0.0
    %1189 = vmatprep.subr.mxu0 0.0
    %1190 = vmatpush1.msra.mxu0 0.0
    %1191 = vmatprep.subr.mxu0 0.0
    %1192 = vmatpush1.msra.mxu0 0.0
    %1193 = vmatprep.subr.mxu0 0.0
    %1194 = vmatpush1.msra.mxu0 0.0
    %1195 = vmatprep.subr.mxu0 0.0
    %1196 = vmatpush1.msra.mxu0 0.0
    %1197 = vmatprep.subr.mxu0 0.0
    %1198 = vmatpush1.msra.mxu0 0.0
    %1199 = vmatprep.subr.mxu0 0.0
    %1200 = vmatpush1.msra.mxu0 0.0
    %1201 = vmatprep.subr.mxu0 0.0
    %1202 = vmatpush1.msra.mxu0 0.0
    %1203 = vmatprep.subr.mxu0 0.0
    %1204 = vmatpush1.msra.mxu0 0.0
    %1205 = vmatprep.subr.mxu0 0.0
    %1206 = vmatpush1.msra.mxu0 0.0
    %1207 = vmatprep.subr.mxu0 0.0
    %1208 = vmatpush1.msra.mxu0 %v1172
    %1209 = vmatprep.subr.mxu0 0.0
    %1210 = vmatpush2.msra.mxu0 0.0
    %1211 = vmatprep.subr.mxu0 0.0
    %1212 = vmatpush2.msra.mxu0 0.0
    %1213 = vmatprep.subr.mxu0 0.0
    %1214 = vmatpush2.msra.mxu0 0.0
    %1215 = vmatprep.subr.mxu0 0.0
    %1216 = vmatpush2.msra.mxu0 0.0
    %1217 = vmatprep.subr.mxu0 0.0
    %1218 = vmatpush2.msra.mxu0 0.0
    %1219 = vmatprep.subr.mxu0 0.0
    %1220 = vmatpush2.msra.mxu0 0.0
    %1221 = vmatprep.subr.mxu0 0.0
    %1222 = vmatpush2.msra.mxu0 0.0
    %1223 = vmatprep.subr.mxu0 0.0
    %1224 = vmatpush2.msra.mxu0 0.0
    %1225 = vmatprep.subr.mxu0 0.0
    %1226 = vmatpush2.msra.mxu0 0.0
    %1227 = vmatprep.subr.mxu0 0.0
    %1228 = vmatpush2.msra.mxu0 0.0
    %1229 = vmatprep.subr.mxu0 0.0
    %1230 = vmatpush2.msra.mxu0 0.0
    %1231 = vmatprep.subr.mxu0 0.0
    %1232 = vmatpush2.msra.mxu0 0.0
    %1233 = vmatprep.subr.mxu0 0.0
    %1234 = vmatpush2.msra.mxu0 0.0
    %1235 = vmatprep.subr.mxu0 0.0
    %1236 = vmatpush2.msra.mxu0 0.0
    %1237 = vmatprep.subr.mxu0 0.0
    %1238 = vmatpush2.msra.mxu0 0.0
    %1239 = vmatprep.subr.mxu0 0.0
    %1240 = vmatpush2.msra.mxu0 0.0
    %1241 = vmatprep.mubr.f32.mxu0 0.0
    %1242 = vmatmul.mubr.f32.gmra.mxu0 %v1175
    %v1243 = vpop.f32.mrf.mxu0
    %v1244 = vadd.f32 0.0, %v1243
    %v1245 = vpop.f32.mrf.mxu0
    %1246 = vdwg.mxu0
    %v1248 = vsel %vm153, %v1244, 0
    %1250 = vmatprep.subr.mxu0 0.0
    %1251 = vmatpush1.msra.mxu0 0.0
    %1252 = vmatprep.subr.mxu0 0.0
    %1253 = vmatpush1.msra.mxu0 0.0
    %1254 = vmatprep.subr.mxu0 0.0
    %1255 = vmatpush1.msra.mxu0 0.0
    %1256 = vmatprep.subr.mxu0 0.0
    %1257 = vmatpush1.msra.mxu0 0.0
    %1258 = vmatprep.subr.mxu0 0.0
    %1259 = vmatpush1.msra.mxu0 0.0
    %1260 = vmatprep.subr.mxu0 0.0
    %1261 = vmatpush1.msra.mxu0 0.0
    %1262 = vmatprep.subr.mxu0 0.0
    %1263 = vmatpush1.msra.mxu0 0.0
    %1264 = vmatprep.subr.mxu0 0.0
    %1265 = vmatpush1.msra.mxu0 0.0
    %1266 = vmatprep.subr.mxu0 0.0
    %1267 = vmatpush1.msra.mxu0 0.0
    %1268 = vmatprep.subr.mxu0 0.0
    %1269 = vmatpush1.msra.mxu0 0.0
    %1270 = vmatprep.subr.mxu0 0.0
    %1271 = vmatpush1.msra.mxu0 0.0
    %1272 = vmatprep.subr.mxu0 0.0
    %1273 = vmatpush1.msra.mxu0 0.0
    %1274 = vmatprep.subr.mxu0 0.0
    %1275 = vmatpush1.msra.mxu0 0.0
    %1276 = vmatprep.subr.mxu0 0.0
    %1277 = vmatpush1.msra.mxu0 0.0
    %1278 = vmatprep.subr.mxu0 0.0
    %1279 = vmatpush1.msra.mxu0 0.0
    %1280 = vmatprep.subr.mxu0 0.0
    %1281 = vmatpush1.msra.mxu0 %v871
    %1282 = vmatprep.subr.mxu0 0.0
    %1283 = vmatpush2.msra.mxu0 0.0
    %1284 = vmatprep.subr.mxu0 0.0
    %1285 = vmatpush2.msra.mxu0 0.0
    %1286 = vmatprep.subr.mxu0 0.0
    %1287 = vmatpush2.msra.mxu0 0.0
    %1288 = vmatprep.subr.mxu0 0.0
    %1289 = vmatpush2.msra.mxu0 0.0
    %1290 = vmatprep.subr.mxu0 0.0
    %1291 = vmatpush2.msra.mxu0 0.0
    %1292 = vmatprep.subr.mxu0 0.0
    %1293 = vmatpush2.msra.mxu0 0.0
    %1294 = vmatprep.subr.mxu0 0.0
    %1295 = vmatpush2.msra.mxu0 0.0
    %1296 = vmatprep.subr.mxu0 0.0
    %1297 = vmatpush2.msra.mxu0 0.0
    %1298 = vmatprep.subr.mxu0 0.0
    %1299 = vmatpush2.msra.mxu0 0.0
    %1300 = vmatprep.subr.mxu0 0.0
    %1301 = vmatpush2.msra.mxu0 0.0
    %1302 = vmatprep.subr.mxu0 0.0
    %1303 = vmatpush2.msra.mxu0 0.0
    %1304 = vmatprep.subr.mxu0 0.0
    %1305 = vmatpush2.msra.mxu0 0.0
    %1306 = vmatprep.subr.mxu0 0.0
    %1307 = vmatpush2.msra.mxu0 0.0
    %1308 = vmatprep.subr.mxu0 0.0
    %1309 = vmatpush2.msra.mxu0 0.0
    %1310 = vmatprep.subr.mxu0 0.0
    %1311 = vmatpush2.msra.mxu0 0.0
    %1312 = vmatprep.subr.mxu0 0.0
    %1313 = vmatpush2.msra.mxu0 0.0
    %1314 = vmatprep.mubr.f32.mxu0 0.0
    %1315 = vmatmul.mubr.f32.gmra.mxu0 %v1248
    %v1316 = vpop.f32.mrf.mxu0
    %v1317 = vadd.f32 0.0, %v1316
    %v1318 = vpop.f32.mrf.mxu0
    %1319 = vdwg.mxu0
    %v1320 = vadd.f32 %v1168, %v1317
    %1321 = vrot.lane.b32.xlu0 %v142, 40
    %v1322 = vpop.permute.xlu0 %1321
    %v1325 = vsel %vm153, %v864, 0
    %1327 = vmatprep.subr.mxu0 0.0
    %1328 = vmatpush1.msra.mxu0 0.0
    %1329 = vmatprep.subr.mxu0 0.0
    %1330 = vmatpush1.msra.mxu0 0.0
    %1331 = vmatprep.subr.mxu0 0.0
    %1332 = vmatpush1.msra.mxu0 0.0
    %1333 = vmatprep.subr.mxu0 0.0
    %1334 = vmatpush1.msra.mxu0 0.0
    %1335 = vmatprep.subr.mxu0 0.0
    %1336 = vmatpush1.msra.mxu0 0.0
    %1337 = vmatprep.subr.mxu0 0.0
    %1338 = vmatpush1.msra.mxu0 0.0
    %1339 = vmatprep.subr.mxu0 0.0
    %1340 = vmatpush1.msra.mxu0 0.0
    %1341 = vmatprep.subr.mxu0 0.0
    %1342 = vmatpush1.msra.mxu0 0.0
    %1343 = vmatprep.subr.mxu0 0.0
    %1344 = vmatpush1.msra.mxu0 0.0
    %1345 = vmatprep.subr.mxu0 0.0
    %1346 = vmatpush1.msra.mxu0 0.0
    %1347 = vmatprep.subr.mxu0 0.0
    %1348 = vmatpush1.msra.mxu0 0.0
    %1349 = vmatprep.subr.mxu0 0.0
    %1350 = vmatpush1.msra.mxu0 0.0
    %1351 = vmatprep.subr.mxu0 0.0
    %1352 = vmatpush1.msra.mxu0 0.0
    %1353 = vmatprep.subr.mxu0 0.0
    %1354 = vmatpush1.msra.mxu0 0.0
    %1355 = vmatprep.subr.mxu0 0.0
    %1356 = vmatpush1.msra.mxu0 0.0
    %1357 = vmatprep.subr.mxu0 0.0
    %1358 = vmatpush1.msra.mxu0 %v1322
    %1359 = vmatprep.subr.mxu0 0.0
    %1360 = vmatpush2.msra.mxu0 0.0
    %1361 = vmatprep.subr.mxu0 0.0
    %1362 = vmatpush2.msra.mxu0 0.0
    %1363 = vmatprep.subr.mxu0 0.0
    %1364 = vmatpush2.msra.mxu0 0.0
    %1365 = vmatprep.subr.mxu0 0.0
    %1366 = vmatpush2.msra.mxu0 0.0
    %1367 = vmatprep.subr.mxu0 0.0
    %1368 = vmatpush2.msra.mxu0 0.0
    %1369 = vmatprep.subr.mxu0 0.0
    %1370 = vmatpush2.msra.mxu0 0.0
    %1371 = vmatprep.subr.mxu0 0.0
    %1372 = vmatpush2.msra.mxu0 0.0
    %1373 = vmatprep.subr.mxu0 0.0
    %1374 = vmatpush2.msra.mxu0 0.0
    %1375 = vmatprep.subr.mxu0 0.0
    %1376 = vmatpush2.msra.mxu0 0.0
    %1377 = vmatprep.subr.mxu0 0.0
    %1378 = vmatpush2.msra.mxu0 0.0
    %1379 = vmatprep.subr.mxu0 0.0
    %1380 = vmatpush2.msra.mxu0 0.0
    %1381 = vmatprep.subr.mxu0 0.0
    %1382 = vmatpush2.msra.mxu0 0.0
    %1383 = vmatprep.subr.mxu0 0.0
    %1384 = vmatpush2.msra.mxu0 0.0
    %1385 = vmatprep.subr.mxu0 0.0
    %1386 = vmatpush2.msra.mxu0 0.0
    %1387 = vmatprep.subr.mxu0 0.0
    %1388 = vmatpush2.msra.mxu0 0.0
    %1389 = vmatprep.subr.mxu0 0.0
    %1390 = vmatpush2.msra.mxu0 0.0
    %1391 = vmatprep.mubr.f32.mxu0 0.0
    %1392 = vmatmul.mubr.f32.gmra.mxu0 %v1325
    %v1393 = vpop.f32.mrf.mxu0
    %v1394 = vadd.f32 0.0, %v1393
    %v1395 = vpop.f32.mrf.mxu0
    %1396 = vdwg.mxu0
    %v1398 = vsel %vm153, %v1394, 0
    %1400 = vmatprep.subr.mxu0 0.0
    %1401 = vmatpush1.msra.mxu0 0.0
    %1402 = vmatprep.subr.mxu0 0.0
    %1403 = vmatpush1.msra.mxu0 0.0
    %1404 = vmatprep.subr.mxu0 0.0
    %1405 = vmatpush1.msra.mxu0 0.0
    %1406 = vmatprep.subr.mxu0 0.0
    %1407 = vmatpush1.msra.mxu0 0.0
    %1408 = vmatprep.subr.mxu0 0.0
    %1409 = vmatpush1.msra.mxu0 0.0
    %1410 = vmatprep.subr.mxu0 0.0
    %1411 = vmatpush1.msra.mxu0 0.0
    %1412 = vmatprep.subr.mxu0 0.0
    %1413 = vmatpush1.msra.mxu0 0.0
    %1414 = vmatprep.subr.mxu0 0.0
    %1415 = vmatpush1.msra.mxu0 0.0
    %1416 = vmatprep.subr.mxu0 0.0
    %1417 = vmatpush1.msra.mxu0 0.0
    %1418 = vmatprep.subr.mxu0 0.0
    %1419 = vmatpush1.msra.mxu0 0.0
    %1420 = vmatprep.subr.mxu0 0.0
    %1421 = vmatpush1.msra.mxu0 0.0
    %1422 = vmatprep.subr.mxu0 0.0
    %1423 = vmatpush1.msra.mxu0 0.0
    %1424 = vmatprep.subr.mxu0 0.0
    %1425 = vmatpush1.msra.mxu0 0.0
    %1426 = vmatprep.subr.mxu0 0.0
    %1427 = vmatpush1.msra.mxu0 0.0
    %1428 = vmatprep.subr.mxu0 0.0
    %1429 = vmatpush1.msra.mxu0 0.0
    %1430 = vmatprep.subr.mxu0 0.0
    %1431 = vmatpush1.msra.mxu0 %v872
    %1432 = vmatprep.subr.mxu0 0.0
    %1433 = vmatpush2.msra.mxu0 0.0
    %1434 = vmatprep.subr.mxu0 0.0
    %1435 = vmatpush2.msra.mxu0 0.0
    %1436 = vmatprep.subr.mxu0 0.0
    %1437 = vmatpush2.msra.mxu0 0.0
    %1438 = vmatprep.subr.mxu0 0.0
    %1439 = vmatpush2.msra.mxu0 0.0
    %1440 = vmatprep.subr.mxu0 0.0
    %1441 = vmatpush2.msra.mxu0 0.0
    %1442 = vmatprep.subr.mxu0 0.0
    %1443 = vmatpush2.msra.mxu0 0.0
    %1444 = vmatprep.subr.mxu0 0.0
    %1445 = vmatpush2.msra.mxu0 0.0
    %1446 = vmatprep.subr.mxu0 0.0
    %1447 = vmatpush2.msra.mxu0 0.0
    %1448 = vmatprep.subr.mxu0 0.0
    %1449 = vmatpush2.msra.mxu0 0.0
    %1450 = vmatprep.subr.mxu0 0.0
    %1451 = vmatpush2.msra.mxu0 0.0
    %1452 = vmatprep.subr.mxu0 0.0
    %1453 = vmatpush2.msra.mxu0 0.0
    %1454 = vmatprep.subr.mxu0 0.0
    %1455 = vmatpush2.msra.mxu0 0.0
    %1456 = vmatprep.subr.mxu0 0.0
    %1457 = vmatpush2.msra.mxu0 0.0
    %1458 = vmatprep.subr.mxu0 0.0
    %1459 = vmatpush2.msra.mxu0 0.0
    %1460 = vmatprep.subr.mxu0 0.0
    %1461 = vmatpush2.msra.mxu0 0.0
    %1462 = vmatprep.subr.mxu0 0.0
    %1463 = vmatpush2.msra.mxu0 0.0
    %1464 = vmatprep.mubr.f32.mxu0 0.0
    %1465 = vmatmul.mubr.f32.gmra.mxu0 %v1398
    %v1466 = vpop.f32.mrf.mxu0
    %v1467 = vadd.f32 0.0, %v1466
    %v1468 = vpop.f32.mrf.mxu0
    %1469 = vdwg.mxu0
    %v1470 = vadd.f32 %v1320, %v1467
    %1471 = vrot.lane.b32.xlu0 %v147, 64
    %v1472 = vpop.permute.xlu0 %1471
    %v1475 = vsel %vm153, %v865, 0
    %1477 = vmatprep.subr.mxu0 0.0
    %1478 = vmatpush1.msra.mxu0 0.0
    %1479 = vmatprep.subr.mxu0 0.0
    %1480 = vmatpush1.msra.mxu0 0.0
    %1481 = vmatprep.subr.mxu0 0.0
    %1482 = vmatpush1.msra.mxu0 0.0
    %1483 = vmatprep.subr.mxu0 0.0
    %1484 = vmatpush1.msra.mxu0 0.0
    %1485 = vmatprep.subr.mxu0 0.0
    %1486 = vmatpush1.msra.mxu0 0.0
    %1487 = vmatprep.subr.mxu0 0.0
    %1488 = vmatpush1.msra.mxu0 0.0
    %1489 = vmatprep.subr.mxu0 0.0
    %1490 = vmatpush1.msra.mxu0 0.0
    %1491 = vmatprep.subr.mxu0 0.0
    %1492 = vmatpush1.msra.mxu0 0.0
    %1493 = vmatprep.subr.mxu0 0.0
    %1494 = vmatpush1.msra.mxu0 0.0
    %1495 = vmatprep.subr.mxu0 0.0
    %1496 = vmatpush1.msra.mxu0 0.0
    %1497 = vmatprep.subr.mxu0 0.0
    %1498 = vmatpush1.msra.mxu0 0.0
    %1499 = vmatprep.subr.mxu0 0.0
    %1500 = vmatpush1.msra.mxu0 0.0
    %1501 = vmatprep.subr.mxu0 0.0
    %1502 = vmatpush1.msra.mxu0 0.0
    %1503 = vmatprep.subr.mxu0 0.0
    %1504 = vmatpush1.msra.mxu0 0.0
    %1505 = vmatprep.subr.mxu0 0.0
    %1506 = vmatpush1.msra.mxu0 0.0
    %1507 = vmatprep.subr.mxu0 0.0
    %1508 = vmatpush1.msra.mxu0 %v1472
    %1509 = vmatprep.subr.mxu0 0.0
    %1510 = vmatpush2.msra.mxu0 0.0
    %1511 = vmatprep.subr.mxu0 0.0
    %1512 = vmatpush2.msra.mxu0 0.0
    %1513 = vmatprep.subr.mxu0 0.0
    %1514 = vmatpush2.msra.mxu0 0.0
    %1515 = vmatprep.subr.mxu0 0.0
    %1516 = vmatpush2.msra.mxu0 0.0
    %1517 = vmatprep.subr.mxu0 0.0
    %1518 = vmatpush2.msra.mxu0 0.0
    %1519 = vmatprep.subr.mxu0 0.0
    %1520 = vmatpush2.msra.mxu0 0.0
    %1521 = vmatprep.subr.mxu0 0.0
    %1522 = vmatpush2.msra.mxu0 0.0
    %1523 = vmatprep.subr.mxu0 0.0
    %1524 = vmatpush2.msra.mxu0 0.0
    %1525 = vmatprep.subr.mxu0 0.0
    %1526 = vmatpush2.msra.mxu0 0.0
    %1527 = vmatprep.subr.mxu0 0.0
    %1528 = vmatpush2.msra.mxu0 0.0
    %1529 = vmatprep.subr.mxu0 0.0
    %1530 = vmatpush2.msra.mxu0 0.0
    %1531 = vmatprep.subr.mxu0 0.0
    %1532 = vmatpush2.msra.mxu0 0.0
    %1533 = vmatprep.subr.mxu0 0.0
    %1534 = vmatpush2.msra.mxu0 0.0
    %1535 = vmatprep.subr.mxu0 0.0
    %1536 = vmatpush2.msra.mxu0 0.0
    %1537 = vmatprep.subr.mxu0 0.0
    %1538 = vmatpush2.msra.mxu0 0.0
    %1539 = vmatprep.subr.mxu0 0.0
    %1540 = vmatpush2.msra.mxu0 0.0
    %1541 = vmatprep.mubr.f32.mxu0 0.0
    %1542 = vmatmul.mubr.f32.gmra.mxu0 %v1475
    %v1543 = vpop.f32.mrf.mxu0
    %v1544 = vadd.f32 0.0, %v1543
    %v1545 = vpop.f32.mrf.mxu0
    %1546 = vdwg.mxu0
    %1547 = vrot.lane.b32.xlu0 %v147, 56
    %v1548 = vpop.permute.xlu0 %1547
    %v1551 = vsel %vm153, %v866, 0
    %1553 = vmatprep.subr.mxu0 0.0
    %1554 = vmatpush1.msra.mxu0 0.0
    %1555 = vmatprep.subr.mxu0 0.0
    %1556 = vmatpush1.msra.mxu0 0.0
    %1557 = vmatprep.subr.mxu0 0.0
    %1558 = vmatpush1.msra.mxu0 0.0
    %1559 = vmatprep.subr.mxu0 0.0
    %1560 = vmatpush1.msra.mxu0 0.0
    %1561 = vmatprep.subr.mxu0 0.0
    %1562 = vmatpush1.msra.mxu0 0.0
    %1563 = vmatprep.subr.mxu0 0.0
    %1564 = vmatpush1.msra.mxu0 0.0
    %1565 = vmatprep.subr.mxu0 0.0
    %1566 = vmatpush1.msra.mxu0 0.0
    %1567 = vmatprep.subr.mxu0 0.0
    %1568 = vmatpush1.msra.mxu0 0.0
    %1569 = vmatprep.subr.mxu0 0.0
    %1570 = vmatpush1.msra.mxu0 0.0
    %1571 = vmatprep.subr.mxu0 0.0
    %1572 = vmatpush1.msra.mxu0 0.0
    %1573 = vmatprep.subr.mxu0 0.0
    %1574 = vmatpush1.msra.mxu0 0.0
    %1575 = vmatprep.subr.mxu0 0.0
    %1576 = vmatpush1.msra.mxu0 0.0
    %1577 = vmatprep.subr.mxu0 0.0
    %1578 = vmatpush1.msra.mxu0 0.0
    %1579 = vmatprep.subr.mxu0 0.0
    %1580 = vmatpush1.msra.mxu0 0.0
    %1581 = vmatprep.subr.mxu0 0.0
    %1582 = vmatpush1.msra.mxu0 0.0
    %1583 = vmatprep.subr.mxu0 0.0
    %1584 = vmatpush1.msra.mxu0 %v1548
    %1585 = vmatprep.subr.mxu0 0.0
    %1586 = vmatpush2.msra.mxu0 0.0
    %1587 = vmatprep.subr.mxu0 0.0
    %1588 = vmatpush2.msra.mxu0 0.0
    %1589 = vmatprep.subr.mxu0 0.0
    %1590 = vmatpush2.msra.mxu0 0.0
    %1591 = vmatprep.subr.mxu0 0.0
    %1592 = vmatpush2.msra.mxu0 0.0
    %1593 = vmatprep.subr.mxu0 0.0
    %1594 = vmatpush2.msra.mxu0 0.0
    %1595 = vmatprep.subr.mxu0 0.0
    %1596 = vmatpush2.msra.mxu0 0.0
    %1597 = vmatprep.subr.mxu0 0.0
    %1598 = vmatpush2.msra.mxu0 0.0
    %1599 = vmatprep.subr.mxu0 0.0
    %1600 = vmatpush2.msra.mxu0 0.0
    %1601 = vmatprep.subr.mxu0 0.0
    %1602 = vmatpush2.msra.mxu0 0.0
    %1603 = vmatprep.subr.mxu0 0.0
    %1604 = vmatpush2.msra.mxu0 0.0
    %1605 = vmatprep.subr.mxu0 0.0
    %1606 = vmatpush2.msra.mxu0 0.0
    %1607 = vmatprep.subr.mxu0 0.0
    %1608 = vmatpush2.msra.mxu0 0.0
    %1609 = vmatprep.subr.mxu0 0.0
    %1610 = vmatpush2.msra.mxu0 0.0
    %1611 = vmatprep.subr.mxu0 0.0
    %1612 = vmatpush2.msra.mxu0 0.0
    %1613 = vmatprep.subr.mxu0 0.0
    %1614 = vmatpush2.msra.mxu0 0.0
    %1615 = vmatprep.subr.mxu0 0.0
    %1616 = vmatpush2.msra.mxu0 0.0
    %1617 = vmatprep.mubr.f32.mxu0 0.0
    %1618 = vmatmul.mubr.f32.gmra.mxu0 %v1551
    %v1619 = vpop.f32.mrf.mxu0
    %v1620 = vadd.f32 0.0, %v1619
    %v1621 = vpop.f32.mrf.mxu0
    %1622 = vdwg.mxu0
    %v1624 = vsel %vm153, %v1620, 0
    %1626 = vmatprep.subr.mxu0 0.0
    %1627 = vmatpush1.msra.mxu0 0.0
    %1628 = vmatprep.subr.mxu0 0.0
    %1629 = vmatpush1.msra.mxu0 0.0
    %1630 = vmatprep.subr.mxu0 0.0
    %1631 = vmatpush1.msra.mxu0 0.0
    %1632 = vmatprep.subr.mxu0 0.0
    %1633 = vmatpush1.msra.mxu0 0.0
    %1634 = vmatprep.subr.mxu0 0.0
    %1635 = vmatpush1.msra.mxu0 0.0
    %1636 = vmatprep.subr.mxu0 0.0
    %1637 = vmatpush1.msra.mxu0 0.0
    %1638 = vmatprep.subr.mxu0 0.0
    %1639 = vmatpush1.msra.mxu0 0.0
    %1640 = vmatprep.subr.mxu0 0.0
    %1641 = vmatpush1.msra.mxu0 0.0
    %1642 = vmatprep.subr.mxu0 0.0
    %1643 = vmatpush1.msra.mxu0 0.0
    %1644 = vmatprep.subr.mxu0 0.0
    %1645 = vmatpush1.msra.mxu0 0.0
    %1646 = vmatprep.subr.mxu0 0.0
    %1647 = vmatpush1.msra.mxu0 0.0
    %1648 = vmatprep.subr.mxu0 0.0
    %1649 = vmatpush1.msra.mxu0 0.0
    %1650 = vmatprep.subr.mxu0 0.0
    %1651 = vmatpush1.msra.mxu0 0.0
    %1652 = vmatprep.subr.mxu0 0.0
    %1653 = vmatpush1.msra.mxu0 0.0
    %1654 = vmatprep.subr.mxu0 0.0
    %1655 = vmatpush1.msra.mxu0 0.0
    %1656 = vmatprep.subr.mxu0 0.0
    %1657 = vmatpush1.msra.mxu0 %v870
    %1658 = vmatprep.subr.mxu0 0.0
    %1659 = vmatpush2.msra.mxu0 0.0
    %1660 = vmatprep.subr.mxu0 0.0
    %1661 = vmatpush2.msra.mxu0 0.0
    %1662 = vmatprep.subr.mxu0 0.0
    %1663 = vmatpush2.msra.mxu0 0.0
    %1664 = vmatprep.subr.mxu0 0.0
    %1665 = vmatpush2.msra.mxu0 0.0
    %1666 = vmatprep.subr.mxu0 0.0
    %1667 = vmatpush2.msra.mxu0 0.0
    %1668 = vmatprep.subr.mxu0 0.0
    %1669 = vmatpush2.msra.mxu0 0.0
    %1670 = vmatprep.subr.mxu0 0.0
    %1671 = vmatpush2.msra.mxu0 0.0
    %1672 = vmatprep.subr.mxu0 0.0
    %1673 = vmatpush2.msra.mxu0 0.0
    %1674 = vmatprep.subr.mxu0 0.0
    %1675 = vmatpush2.msra.mxu0 0.0
    %1676 = vmatprep.subr.mxu0 0.0
    %1677 = vmatpush2.msra.mxu0 0.0
    %1678 = vmatprep.subr.mxu0 0.0
    %1679 = vmatpush2.msra.mxu0 0.0
    %1680 = vmatprep.subr.mxu0 0.0
    %1681 = vmatpush2.msra.mxu0 0.0
    %1682 = vmatprep.subr.mxu0 0.0
    %1683 = vmatpush2.msra.mxu0 0.0
    %1684 = vmatprep.subr.mxu0 0.0
    %1685 = vmatpush2.msra.mxu0 0.0
    %1686 = vmatprep.subr.mxu0 0.0
    %1687 = vmatpush2.msra.mxu0 0.0
    %1688 = vmatprep.subr.mxu0 0.0
    %1689 = vmatpush2.msra.mxu0 0.0
    %1690 = vmatprep.mubr.f32.mxu0 0.0
    %1691 = vmatmul.mubr.f32.gmra.mxu0 %v1624
    %v1692 = vpop.f32.mrf.mxu0
    %v1693 = vadd.f32 0.0, %v1692
    %v1694 = vpop.f32.mrf.mxu0
    %1695 = vdwg.mxu0
    %v1697 = vsel %vm153, %v1544, 0
    %1699 = vmatprep.subr.mxu0 0.0
    %1700 = vmatpush1.msra.mxu0 0.0
    %1701 = vmatprep.subr.mxu0 0.0
    %1702 = vmatpush1.msra.mxu0 0.0
    %1703 = vmatprep.subr.mxu0 0.0
    %1704 = vmatpush1.msra.mxu0 0.0
    %1705 = vmatprep.subr.mxu0 0.0
    %1706 = vmatpush1.msra.mxu0 0.0
    %1707 = vmatprep.subr.mxu0 0.0
    %1708 = vmatpush1.msra.mxu0 0.0
    %1709 = vmatprep.subr.mxu0 0.0
    %1710 = vmatpush1.msra.mxu0 0.0
    %1711 = vmatprep.subr.mxu0 0.0
    %1712 = vmatpush1.msra.mxu0 0.0
    %1713 = vmatprep.subr.mxu0 0.0
    %1714 = vmatpush1.msra.mxu0 0.0
    %1715 = vmatprep.subr.mxu0 0.0
    %1716 = vmatpush1.msra.mxu0 0.0
    %1717 = vmatprep.subr.mxu0 0.0
    %1718 = vmatpush1.msra.mxu0 0.0
    %1719 = vmatprep.subr.mxu0 0.0
    %1720 = vmatpush1.msra.mxu0 0.0
    %1721 = vmatprep.subr.mxu0 0.0
    %1722 = vmatpush1.msra.mxu0 0.0
    %1723 = vmatprep.subr.mxu0 0.0
    %1724 = vmatpush1.msra.mxu0 0.0
    %1725 = vmatprep.subr.mxu0 0.0
    %1726 = vmatpush1.msra.mxu0 0.0
    %1727 = vmatprep.subr.mxu0 0.0
    %1728 = vmatpush1.msra.mxu0 0.0
    %1729 = vmatprep.subr.mxu0 0.0
    %1730 = vmatpush1.msra.mxu0 %v869
    %1731 = vmatprep.subr.mxu0 0.0
    %1732 = vmatpush2.msra.mxu0 0.0
    %1733 = vmatprep.subr.mxu0 0.0
    %1734 = vmatpush2.msra.mxu0 0.0
    %1735 = vmatprep.subr.mxu0 0.0
    %1736 = vmatpush2.msra.mxu0 0.0
    %1737 = vmatprep.subr.mxu0 0.0
    %1738 = vmatpush2.msra.mxu0 0.0
    %1739 = vmatprep.subr.mxu0 0.0
    %1740 = vmatpush2.msra.mxu0 0.0
    %1741 = vmatprep.subr.mxu0 0.0
    %1742 = vmatpush2.msra.mxu0 0.0
    %1743 = vmatprep.subr.mxu0 0.0
    %1744 = vmatpush2.msra.mxu0 0.0
    %1745 = vmatprep.subr.mxu0 0.0
    %1746 = vmatpush2.msra.mxu0 0.0
    %1747 = vmatprep.subr.mxu0 0.0
    %1748 = vmatpush2.msra.mxu0 0.0
    %1749 = vmatprep.subr.mxu0 0.0
    %1750 = vmatpush2.msra.mxu0 0.0
    %1751 = vmatprep.subr.mxu0 0.0
    %1752 = vmatpush2.msra.mxu0 0.0
    %1753 = vmatprep.subr.mxu0 0.0
    %1754 = vmatpush2.msra.mxu0 0.0
    %1755 = vmatprep.subr.mxu0 0.0
    %1756 = vmatpush2.msra.mxu0 0.0
    %1757 = vmatprep.subr.mxu0 0.0
    %1758 = vmatpush2.msra.mxu0 0.0
    %1759 = vmatprep.subr.mxu0 0.0
    %1760 = vmatpush2.msra.mxu0 0.0
    %1761 = vmatprep.subr.mxu0 0.0
    %1762 = vmatpush2.msra.mxu0 0.0
    %1763 = vmatprep.mubr.f32.mxu0 0.0
    %1764 = vmatmul.mubr.f32.gmra.mxu0 %v1697
    %v1765 = vpop.f32.mrf.mxu0
    %v1766 = vadd.f32 %v1693, %v1765
    %v1767 = vpop.f32.mrf.mxu0
    %1768 = vdwg.mxu0
    %1769 = vrot.lane.b32.xlu0 %v147, 48
    %v1770 = vpop.permute.xlu0 %1769
    %v1773 = vsel %vm153, %v867, 0
    %1775 = vmatprep.subr.mxu0 0.0
    %1776 = vmatpush1.msra.mxu0 0.0
    %1777 = vmatprep.subr.mxu0 0.0
    %1778 = vmatpush1.msra.mxu0 0.0
    %1779 = vmatprep.subr.mxu0 0.0
    %1780 = vmatpush1.msra.mxu0 0.0
    %1781 = vmatprep.subr.mxu0 0.0
    %1782 = vmatpush1.msra.mxu0 0.0
    %1783 = vmatprep.subr.mxu0 0.0
    %1784 = vmatpush1.msra.mxu0 0.0
    %1785 = vmatprep.subr.mxu0 0.0
    %1786 = vmatpush1.msra.mxu0 0.0
    %1787 = vmatprep.subr.mxu0 0.0
    %1788 = vmatpush1.msra.mxu0 0.0
    %1789 = vmatprep.subr.mxu0 0.0
    %1790 = vmatpush1.msra.mxu0 0.0
    %1791 = vmatprep.subr.mxu0 0.0
    %1792 = vmatpush1.msra.mxu0 0.0
    %1793 = vmatprep.subr.mxu0 0.0
    %1794 = vmatpush1.msra.mxu0 0.0
    %1795 = vmatprep.subr.mxu0 0.0
    %1796 = vmatpush1.msra.mxu0 0.0
    %1797 = vmatprep.subr.mxu0 0.0
    %1798 = vmatpush1.msra.mxu0 0.0
    %1799 = vmatprep.subr.mxu0 0.0
    %1800 = vmatpush1.msra.mxu0 0.0
    %1801 = vmatprep.subr.mxu0 0.0
    %1802 = vmatpush1.msra.mxu0 0.0
    %1803 = vmatprep.subr.mxu0 0.0
    %1804 = vmatpush1.msra.mxu0 0.0
    %1805 = vmatprep.subr.mxu0 0.0
    %1806 = vmatpush1.msra.mxu0 %v1770
    %1807 = vmatprep.subr.mxu0 0.0
    %1808 = vmatpush2.msra.mxu0 0.0
    %1809 = vmatprep.subr.mxu0 0.0
    %1810 = vmatpush2.msra.mxu0 0.0
    %1811 = vmatprep.subr.mxu0 0.0
    %1812 = vmatpush2.msra.mxu0 0.0
    %1813 = vmatprep.subr.mxu0 0.0
    %1814 = vmatpush2.msra.mxu0 0.0
    %1815 = vmatprep.subr.mxu0 0.0
    %1816 = vmatpush2.msra.mxu0 0.0
    %1817 = vmatprep.subr.mxu0 0.0
    %1818 = vmatpush2.msra.mxu0 0.0
    %1819 = vmatprep.subr.mxu0 0.0
    %1820 = vmatpush2.msra.mxu0 0.0
    %1821 = vmatprep.subr.mxu0 0.0
    %1822 = vmatpush2.msra.mxu0 0.0
    %1823 = vmatprep.subr.mxu0 0.0
    %1824 = vmatpush2.msra.mxu0 0.0
    %1825 = vmatprep.subr.mxu0 0.0
    %1826 = vmatpush2.msra.mxu0 0.0
    %1827 = vmatprep.subr.mxu0 0.0
    %1828 = vmatpush2.msra.mxu0 0.0
    %1829 = vmatprep.subr.mxu0 0.0
    %1830 = vmatpush2.msra.mxu0 0.0
    %1831 = vmatprep.subr.mxu0 0.0
    %1832 = vmatpush2.msra.mxu0 0.0
    %1833 = vmatprep.subr.mxu0 0.0
    %1834 = vmatpush2.msra.mxu0 0.0
    %1835 = vmatprep.subr.mxu0 0.0
    %1836 = vmatpush2.msra.mxu0 0.0
    %1837 = vmatprep.subr.mxu0 0.0
    %1838 = vmatpush2.msra.mxu0 0.0
    %1839 = vmatprep.mubr.f32.mxu0 0.0
    %1840 = vmatmul.mubr.f32.gmra.mxu0 %v1773
    %v1841 = vpop.f32.mrf.mxu0
    %v1842 = vadd.f32 0.0, %v1841
    %v1843 = vpop.f32.mrf.mxu0
    %1844 = vdwg.mxu0
    %v1846 = vsel %vm153, %v1842, 0
    %1848 = vmatprep.subr.mxu0 0.0
    %1849 = vmatpush1.msra.mxu0 0.0
    %1850 = vmatprep.subr.mxu0 0.0
    %1851 = vmatpush1.msra.mxu0 0.0
    %1852 = vmatprep.subr.mxu0 0.0
    %1853 = vmatpush1.msra.mxu0 0.0
    %1854 = vmatprep.subr.mxu0 0.0
    %1855 = vmatpush1.msra.mxu0 0.0
    %1856 = vmatprep.subr.mxu0 0.0
    %1857 = vmatpush1.msra.mxu0 0.0
    %1858 = vmatprep.subr.mxu0 0.0
    %1859 = vmatpush1.msra.mxu0 0.0
    %1860 = vmatprep.subr.mxu0 0.0
    %1861 = vmatpush1.msra.mxu0 0.0
    %1862 = vmatprep.subr.mxu0 0.0
    %1863 = vmatpush1.msra.mxu0 0.0
    %1864 = vmatprep.subr.mxu0 0.0
    %1865 = vmatpush1.msra.mxu0 0.0
    %1866 = vmatprep.subr.mxu0 0.0
    %1867 = vmatpush1.msra.mxu0 0.0
    %1868 = vmatprep.subr.mxu0 0.0
    %1869 = vmatpush1.msra.mxu0 0.0
    %1870 = vmatprep.subr.mxu0 0.0
    %1871 = vmatpush1.msra.mxu0 0.0
    %1872 = vmatprep.subr.mxu0 0.0
    %1873 = vmatpush1.msra.mxu0 0.0
    %1874 = vmatprep.subr.mxu0 0.0
    %1875 = vmatpush1.msra.mxu0 0.0
    %1876 = vmatprep.subr.mxu0 0.0
    %1877 = vmatpush1.msra.mxu0 0.0
    %1878 = vmatprep.subr.mxu0 0.0
    %1879 = vmatpush1.msra.mxu0 %v871
    %1880 = vmatprep.subr.mxu0 0.0
    %1881 = vmatpush2.msra.mxu0 0.0
    %1882 = vmatprep.subr.mxu0 0.0
    %1883 = vmatpush2.msra.mxu0 0.0
    %1884 = vmatprep.subr.mxu0 0.0
    %1885 = vmatpush2.msra.mxu0 0.0
    %1886 = vmatprep.subr.mxu0 0.0
    %1887 = vmatpush2.msra.mxu0 0.0
    %1888 = vmatprep.subr.mxu0 0.0
    %1889 = vmatpush2.msra.mxu0 0.0
    %1890 = vmatprep.subr.mxu0 0.0
    %1891 = vmatpush2.msra.mxu0 0.0
    %1892 = vmatprep.subr.mxu0 0.0
    %1893 = vmatpush2.msra.mxu0 0.0
    %1894 = vmatprep.subr.mxu0 0.0
    %1895 = vmatpush2.msra.mxu0 0.0
    %1896 = vmatprep.subr.mxu0 0.0
    %1897 = vmatpush2.msra.mxu0 0.0
    %1898 = vmatprep.subr.mxu0 0.0
    %1899 = vmatpush2.msra.mxu0 0.0
    %1900 = vmatprep.subr.mxu0 0.0
    %1901 = vmatpush2.msra.mxu0 0.0
    %1902 = vmatprep.subr.mxu0 0.0
    %1903 = vmatpush2.msra.mxu0 0.0
    %1904 = vmatprep.subr.mxu0 0.0
    %1905 = vmatpush2.msra.mxu0 0.0
    %1906 = vmatprep.subr.mxu0 0.0
    %1907 = vmatpush2.msra.mxu0 0.0
    %1908 = vmatprep.subr.mxu0 0.0
    %1909 = vmatpush2.msra.mxu0 0.0
    %1910 = vmatprep.subr.mxu0 0.0
    %1911 = vmatpush2.msra.mxu0 0.0
    %1912 = vmatprep.mubr.f32.mxu0 0.0
    %1913 = vmatmul.mubr.f32.gmra.mxu0 %v1846
    %v1914 = vpop.f32.mrf.mxu0
    %v1915 = vadd.f32 0.0, %v1914
    %v1916 = vpop.f32.mrf.mxu0
    %1917 = vdwg.mxu0
    %v1918 = vadd.f32 %v1766, %v1915
    %1919 = vrot.lane.b32.xlu0 %v147, 40
    %v1920 = vpop.permute.xlu0 %1919
    %v1923 = vsel %vm153, %v868, 0
    %1925 = vmatprep.subr.mxu0 0.0
    %1926 = vmatpush1.msra.mxu0 0.0
    %1927 = vmatprep.subr.mxu0 0.0
    %1928 = vmatpush1.msra.mxu0 0.0
    %1929 = vmatprep.subr.mxu0 0.0
    %1930 = vmatpush1.msra.mxu0 0.0
    %1931 = vmatprep.subr.mxu0 0.0
    %1932 = vmatpush1.msra.mxu0 0.0
    %1933 = vmatprep.subr.mxu0 0.0
    %1934 = vmatpush1.msra.mxu0 0.0
    %1935 = vmatprep.subr.mxu0 0.0
    %1936 = vmatpush1.msra.mxu0 0.0
    %1937 = vmatprep.subr.mxu0 0.0
    %1938 = vmatpush1.msra.mxu0 0.0
    %1939 = vmatprep.subr.mxu0 0.0
    %1940 = vmatpush1.msra.mxu0 0.0
    %1941 = vmatprep.subr.mxu0 0.0
    %1942 = vmatpush1.msra.mxu0 0.0
    %1943 = vmatprep.subr.mxu0 0.0
    %1944 = vmatpush1.msra.mxu0 0.0
    %1945 = vmatprep.subr.mxu0 0.0
    %1946 = vmatpush1.msra.mxu0 0.0
    %1947 = vmatprep.subr.mxu0 0.0
    %1948 = vmatpush1.msra.mxu0 0.0
    %1949 = vmatprep.subr.mxu0 0.0
    %1950 = vmatpush1.msra.mxu0 0.0
    %1951 = vmatprep.subr.mxu0 0.0
    %1952 = vmatpush1.msra.mxu0 0.0
    %1953 = vmatprep.subr.mxu0 0.0
    %1954 = vmatpush1.msra.mxu0 0.0
    %1955 = vmatprep.subr.mxu0 0.0
    %1956 = vmatpush1.msra.mxu0 %v1920
    %1957 = vmatprep.subr.mxu0 0.0
    %1958 = vmatpush2.msra.mxu0 0.0
    %1959 = vmatprep.subr.mxu0 0.0
    %1960 = vmatpush2.msra.mxu0 0.0
    %1961 = vmatprep.subr.mxu0 0.0
    %1962 = vmatpush2.msra.mxu0 0.0
    %1963 = vmatprep.subr.mxu0 0.0
    %1964 = vmatpush2.msra.mxu0 0.0
    %1965 = vmatprep.subr.mxu0 0.0
    %1966 = vmatpush2.msra.mxu0 0.0
    %1967 = vmatprep.subr.mxu0 0.0
    %1968 = vmatpush2.msra.mxu0 0.0
    %1969 = vmatprep.subr.mxu0 0.0
    %1970 = vmatpush2.msra.mxu0 0.0
    %1971 = vmatprep.subr.mxu0 0.0
    %1972 = vmatpush2.msra.mxu0 0.0
    %1973 = vmatprep.subr.mxu0 0.0
    %1974 = vmatpush2.msra.mxu0 0.0
    %1975 = vmatprep.subr.mxu0 0.0
    %1976 = vmatpush2.msra.mxu0 0.0
    %1977 = vmatprep.subr.mxu0 0.0
    %1978 = vmatpush2.msra.mxu0 0.0
    %1979 = vmatprep.subr.mxu0 0.0
    %1980 = vmatpush2.msra.mxu0 0.0
    %1981 = vmatprep.subr.mxu0 0.0
    %1982 = vmatpush2.msra.mxu0 0.0
    %1983 = vmatprep.subr.mxu0 0.0
    %1984 = vmatpush2.msra.mxu0 0.0
    %1985 = vmatprep.subr.mxu0 0.0
    %1986 = vmatpush2.msra.mxu0 0.0
    %1987 = vmatprep.subr.mxu0 0.0
    %1988 = vmatpush2.msra.mxu0 0.0
    %1989 = vmatprep.mubr.f32.mxu0 0.0
    %1990 = vmatmul.mubr.f32.gmra.mxu0 %v1923
    %v1991 = vpop.f32.mrf.mxu0
    %v1992 = vadd.f32 0.0, %v1991
    %v1993 = vpop.f32.mrf.mxu0
    %1994 = vdwg.mxu0
    %v1996 = vsel %vm153, %v1992, 0
    %1998 = vmatprep.subr.mxu0 0.0
    %1999 = vmatpush1.msra.mxu0 0.0
    %2000 = vmatprep.subr.mxu0 0.0
    %2001 = vmatpush1.msra.mxu0 0.0
    %2002 = vmatprep.subr.mxu0 0.0
    %2003 = vmatpush1.msra.mxu0 0.0
    %2004 = vmatprep.subr.mxu0 0.0
    %2005 = vmatpush1.msra.mxu0 0.0
    %2006 = vmatprep.subr.mxu0 0.0
    %2007 = vmatpush1.msra.mxu0 0.0
    %2008 = vmatprep.subr.mxu0 0.0
    %2009 = vmatpush1.msra.mxu0 0.0
    %2010 = vmatprep.subr.mxu0 0.0
    %2011 = vmatpush1.msra.mxu0 0.0
    %2012 = vmatprep.subr.mxu0 0.0
    %2013 = vmatpush1.msra.mxu0 0.0
    %2014 = vmatprep.subr.mxu0 0.0
    %2015 = vmatpush1.msra.mxu0 0.0
    %2016 = vmatprep.subr.mxu0 0.0
    %2017 = vmatpush1.msra.mxu0 0.0
    %2018 = vmatprep.subr.mxu0 0.0
    %2019 = vmatpush1.msra.mxu0 0.0
    %2020 = vmatprep.subr.mxu0 0.0
    %2021 = vmatpush1.msra.mxu0 0.0
    %2022 = vmatprep.subr.mxu0 0.0
    %2023 = vmatpush1.msra.mxu0 0.0
    %2024 = vmatprep.subr.mxu0 0.0
    %2025 = vmatpush1.msra.mxu0 0.0
    %2026 = vmatprep.subr.mxu0 0.0
    %2027 = vmatpush1.msra.mxu0 0.0
    %2028 = vmatprep.subr.mxu0 0.0
    %2029 = vmatpush1.msra.mxu0 %v872
    %2030 = vmatprep.subr.mxu0 0.0
    %2031 = vmatpush2.msra.mxu0 0.0
    %2032 = vmatprep.subr.mxu0 0.0
    %2033 = vmatpush2.msra.mxu0 0.0
    %2034 = vmatprep.subr.mxu0 0.0
    %2035 = vmatpush2.msra.mxu0 0.0
    %2036 = vmatprep.subr.mxu0 0.0
    %2037 = vmatpush2.msra.mxu0 0.0
    %2038 = vmatprep.subr.mxu0 0.0
    %2039 = vmatpush2.msra.mxu0 0.0
    %2040 = vmatprep.subr.mxu0 0.0
    %2041 = vmatpush2.msra.mxu0 0.0
    %2042 = vmatprep.subr.mxu0 0.0
    %2043 = vmatpush2.msra.mxu0 0.0
    %2044 = vmatprep.subr.mxu0 0.0
    %2045 = vmatpush2.msra.mxu0 0.0
    %2046 = vmatprep.subr.mxu0 0.0
    %2047 = vmatpush2.msra.mxu0 0.0
    %2048 = vmatprep.subr.mxu0 0.0
    %2049 = vmatpush2.msra.mxu0 0.0
    %2050 = vmatprep.subr.mxu0 0.0
    %2051 = vmatpush2.msra.mxu0 0.0
    %2052 = vmatprep.subr.mxu0 0.0
    %2053 = vmatpush2.msra.mxu0 0.0
    %2054 = vmatprep.subr.mxu0 0.0
    %2055 = vmatpush2.msra.mxu0 0.0
    %2056 = vmatprep.subr.mxu0 0.0
    %2057 = vmatpush2.msra.mxu0 0.0
    %2058 = vmatprep.subr.mxu0 0.0
    %2059 = vmatpush2.msra.mxu0 0.0
    %2060 = vmatprep.subr.mxu0 0.0
    %2061 = vmatpush2.msra.mxu0 0.0
    %2062 = vmatprep.mubr.f32.mxu0 0.0
    %2063 = vmatmul.mubr.f32.gmra.mxu0 %v1996
    %v2064 = vpop.f32.mrf.mxu0
    %v2065 = vadd.f32 0.0, %v2064
    %v2066 = vpop.f32.mrf.mxu0
    %2067 = vdwg.mxu0
    %v2068 = vadd.f32 %v1918, %v2065
    %v2069 = vlaneseq
    %v2070 = vshrl.u32 %v2069, 7
    %v2071 = vsub.s32 3, %v2070
    %v2072 = vrot.slane %v20, %v2071
    %v2073 = vadd.f32 %v1470, %v2072
    %v2074 = vadd.f32 %v2068, %v2072
    %v2075 = vadd.f32 %v2073, %v18
    %v2076 = vadd.f32 %v2074, %v19
    %v2077 = vsel %vm21, %v2075, 0.0
    %2078 = vadd.xlane.f32.xlu0 %v2077
    %v2079 = vpop.xlane.xlu0 %2078
    %v2080 = vsel %vm21, %v2076, 0.0
    %2081 = vadd.xlane.f32.xlu0 %v2080
    %v2082 = vpop.xlane.xlu0 %2081
    %v2083 = vmul.f32 %v2079, %v28
    %v2084 = vmul.f32 %v2082, %v28
    %v2085 = vsub.f32 %v2075, %v2083
    %v2086 = vsub.f32 %v2076, %v2084
    %v2087 = vmul.f32 %v2085, %v2085
    %v2088 = vmul.f32 %v2086, %v2086
    %v2089 = vsel %vm21, %v2087, 0.0
    %2090 = vadd.xlane.f32.xlu0 %v2089
    %v2091 = vpop.xlane.xlu0 %2090
    %v2092 = vsel %vm21, %v2088, 0.0
    %2093 = vadd.xlane.f32.xlu0 %v2092
    %v2094 = vpop.xlane.xlu0 %2093
    %v2095 = vmul.f32 %v2091, %v28
    %v2096 = vmul.f32 %v2094, %v28
    %v2097 = vadd.f32 %v2095, 1e-05
    %v2098 = vadd.f32 %v2096, 1e-05
    %v2099 = vrsqrt.pop %v2097
    %v2100 = vrsqrt.pop %v2098
    %v2101 = vmul.f32 %v2085, %v2099
    %v2102 = vmul.f32 %v2086, %v2100
    %v2103 = vlaneseq
    %v2104 = vshrl.u32 %v2103, 7
    %v2105 = vsub.s32 4, %v2104
    %v2106 = vrot.slane %v20, %v2105
    %v2107 = vmul.f32 %v2101, %v2106
    %v2108 = vmul.f32 %v2102, %v2106
    %v2109 = vlaneseq
    %v2110 = vshrl.u32 %v2109, 7
    %v2111 = vsub.s32 5, %v2110
    %v2112 = vrot.slane %v20, %v2111
    %v2113 = vadd.f32 %v2107, %v2112
    %v2114 = vadd.f32 %v2108, %v2112
    %v2115 = vld [vmem:[%s1] sm:$0xff]
    %v2116 = vld [vmem:[%s1 + $0x10] sm:$0xff]
    %v2117 = vld [vmem:[%s1 + $0x20] sm:$0xff]
    %v2118 = vld [vmem:[%s1 + $0x30] sm:$0xff]
    %v2119 = vlaneseq
    %v2120 = vshrl.u32 %v2119, 7
    %v2121 = vsub.s32 6, %v2120
    %v2122 = vrot.slane %v20, %v2121
    %v2124 = vsel %vm21, %v2113, 0
    %v2127 = vsel %vm21, %v2114, 0
    %2129 = vmatprep.subr.mxu0 0.0
    %2130 = vmatpush1.msra.mxu0 0.0
    %2131 = vmatprep.subr.mxu0 0.0
    %2132 = vmatpush1.msra.mxu0 0.0
    %2133 = vmatprep.subr.mxu0 0.0
    %2134 = vmatpush1.msra.mxu0 0.0
    %2135 = vmatprep.subr.mxu0 0.0
    %2136 = vmatpush1.msra.mxu0 0.0
    %2137 = vmatprep.subr.mxu0 0.0
    %2138 = vmatpush1.msra.mxu0 0.0
    %2139 = vmatprep.subr.mxu0 0.0
    %2140 = vmatpush1.msra.mxu0 0.0
    %2141 = vmatprep.subr.mxu0 0.0
    %2142 = vmatpush1.msra.mxu0 0.0
    %2143 = vmatprep.subr.mxu0 0.0
    %2144 = vmatpush1.msra.mxu0 0.0
    %2145 = vmatprep.subr.mxu0 0.0
    %2146 = vmatpush1.msra.mxu0 0.0
    %2147 = vmatprep.subr.mxu0 0.0
    %2148 = vmatpush1.msra.mxu0 0.0
    %2149 = vmatprep.subr.mxu0 0.0
    %2150 = vmatpush1.msra.mxu0 0.0
    %2151 = vmatprep.subr.mxu0 0.0
    %2152 = vmatpush1.msra.mxu0 0.0
    %2153 = vmatprep.subr.mxu0 0.0
    %2154 = vmatpush1.msra.mxu0 %v2118
    %2155 = vmatprep.subr.mxu0 0.0
    %2156 = vmatpush1.msra.mxu0 %v2117
    %2157 = vmatprep.subr.mxu0 0.0
    %2158 = vmatpush1.msra.mxu0 %v2116
    %2159 = vmatprep.subr.mxu0 0.0
    %2160 = vmatpush1.msra.mxu0 %v2115
    %2161 = vmatprep.subr.mxu0 0.0
    %2162 = vmatpush2.msra.mxu0 0.0
    %2163 = vmatprep.subr.mxu0 0.0
    %2164 = vmatpush2.msra.mxu0 0.0
    %2165 = vmatprep.subr.mxu0 0.0
    %2166 = vmatpush2.msra.mxu0 0.0
    %2167 = vmatprep.subr.mxu0 0.0
    %2168 = vmatpush2.msra.mxu0 0.0
    %2169 = vmatprep.subr.mxu0 0.0
    %2170 = vmatpush2.msra.mxu0 0.0
    %2171 = vmatprep.subr.mxu0 0.0
    %2172 = vmatpush2.msra.mxu0 0.0
    %2173 = vmatprep.subr.mxu0 0.0
    %2174 = vmatpush2.msra.mxu0 0.0
    %2175 = vmatprep.subr.mxu0 0.0
    %2176 = vmatpush2.msra.mxu0 0.0
    %2177 = vmatprep.subr.mxu0 0.0
    %2178 = vmatpush2.msra.mxu0 0.0
    %2179 = vmatprep.subr.mxu0 0.0
    %2180 = vmatpush2.msra.mxu0 0.0
    %2181 = vmatprep.subr.mxu0 0.0
    %2182 = vmatpush2.msra.mxu0 0.0
    %2183 = vmatprep.subr.mxu0 0.0
    %2184 = vmatpush2.msra.mxu0 0.0
    %2185 = vmatprep.subr.mxu0 0.0
    %2186 = vmatpush2.msra.mxu0 0.0
    %2187 = vmatprep.subr.mxu0 0.0
    %2188 = vmatpush2.msra.mxu0 0.0
    %2189 = vmatprep.subr.mxu0 0.0
    %2190 = vmatpush2.msra.mxu0 0.0
    %2191 = vmatprep.subr.mxu0 0.0
    %2192 = vmatpush2.msra.mxu0 0.0
    %2193 = vmatprep.mubr.f32.mxu0 0.0
    %2194 = vmatmul.mubr.f32.gmra.mxu0 %v2124
    %v2195 = vpop.f32.mrf.mxu0
    %v2196 = vadd.f32 %v2122, %v2195
    %v2197 = vpop.f32.mrf.mxu0
    %2198 = vmatprep.mubr.f32.mxu0 0.0
    %2199 = vmatmul.mubr.f32.gmra.mxu0 %v2127
    %v2200 = vpop.f32.mrf.mxu0
    %v2201 = vadd.f32 %v2122, %v2200
    %v2202 = vpop.f32.mrf.mxu0
    %2203 = vdwg.mxu0
    %v2204 = vmul.f32 %v2196, 0.5
    %v2205 = vmul.f32 %v2201, 0.5
    %v2206 = vmul.f32 %v2196, 0.70710677
    %v2207 = vmul.f32 %v2201, 0.70710677
    %v2208 = verf.f32.pop %v2206
    %v2209 = verf.f32.pop %v2207
    %v2210 = vadd.f32 %v2208, 1.0
    %v2211 = vadd.f32 %v2209, 1.0
    %v2212 = vmul.f32 %v2204, %v2210
    %v2213 = vmul.f32 %v2205, %v2211
    %v2214 = vld [vmem:[%s2] sm:$0xff]
    %v2215 = vld [vmem:[%s2 + $0x8] sm:$0xff]
    %v2216 = vld [vmem:[%s2 + $0x10] sm:$0xff]
    %v2217 = vld [vmem:[%s2 + $0x18] sm:$0xff]
    %v2218 = vld [vmem:[%s2 + $0x20] sm:$0xff]
    %v2219 = vld [vmem:[%s2 + $0x28] sm:$0xff]
    %v2220 = vld [vmem:[%s2 + $0x30] sm:$0xff]
    %v2221 = vld [vmem:[%s2 + $0x38] sm:$0xff]
    %v2222 = vld [vmem:[%s2 + $0x40] sm:$0xff]
    %v2223 = vld [vmem:[%s2 + $0x48] sm:$0xff]
    %v2224 = vld [vmem:[%s2 + $0x50] sm:$0xff]
    %v2225 = vld [vmem:[%s2 + $0x58] sm:$0xff]
    %v2226 = vld [vmem:[%s2 + $0x60] sm:$0xff]
    %v2227 = vld [vmem:[%s2 + $0x68] sm:$0xff]
    %v2228 = vld [vmem:[%s2 + $0x70] sm:$0xff]
    %v2229 = vld [vmem:[%s2 + $0x78] sm:$0xff]
    %v2230 = vlaneseq
    %v2231 = vshrl.u32 %v2230, 7
    %v2232 = vsub.s32 7, %v2231
    %v2233 = vrot.slane %v20, %v2232
    %2234 = vmatprep.subr.mxu0 0.0
    %2235 = vmatpush1.msra.mxu0 %v2229
    %2236 = vmatprep.subr.mxu0 0.0
    %2237 = vmatpush1.msra.mxu0 %v2228
    %2238 = vmatprep.subr.mxu0 0.0
    %2239 = vmatpush1.msra.mxu0 %v2227
    %2240 = vmatprep.subr.mxu0 0.0
    %2241 = vmatpush1.msra.mxu0 %v2226
    %2242 = vmatprep.subr.mxu0 0.0
    %2243 = vmatpush1.msra.mxu0 %v2225
    %2244 = vmatprep.subr.mxu0 0.0
    %2245 = vmatpush1.msra.mxu0 %v2224
    %2246 = vmatprep.subr.mxu0 0.0
    %2247 = vmatpush1.msra.mxu0 %v2223
    %2248 = vmatprep.subr.mxu0 0.0
    %2249 = vmatpush1.msra.mxu0 %v2222
    %2250 = vmatprep.subr.mxu0 0.0
    %2251 = vmatpush1.msra.mxu0 %v2221
    %2252 = vmatprep.subr.mxu0 0.0
    %2253 = vmatpush1.msra.mxu0 %v2220
    %2254 = vmatprep.subr.mxu0 0.0
    %2255 = vmatpush1.msra.mxu0 %v2219
    %2256 = vmatprep.subr.mxu0 0.0
    %2257 = vmatpush1.msra.mxu0 %v2218
    %2258 = vmatprep.subr.mxu0 0.0
    %2259 = vmatpush1.msra.mxu0 %v2217
    %2260 = vmatprep.subr.mxu0 0.0
    %2261 = vmatpush1.msra.mxu0 %v2216
    %2262 = vmatprep.subr.mxu0 0.0
    %2263 = vmatpush1.msra.mxu0 %v2215
    %2264 = vmatprep.subr.mxu0 0.0
    %2265 = vmatpush1.msra.mxu0 %v2214
    %2266 = vmatprep.subr.mxu0 0.0
    %2267 = vmatpush2.msra.mxu0 0.0
    %2268 = vmatprep.subr.mxu0 0.0
    %2269 = vmatpush2.msra.mxu0 0.0
    %2270 = vmatprep.subr.mxu0 0.0
    %2271 = vmatpush2.msra.mxu0 0.0
    %2272 = vmatprep.subr.mxu0 0.0
    %2273 = vmatpush2.msra.mxu0 0.0
    %2274 = vmatprep.subr.mxu0 0.0
    %2275 = vmatpush2.msra.mxu0 0.0
    %2276 = vmatprep.subr.mxu0 0.0
    %2277 = vmatpush2.msra.mxu0 0.0
    %2278 = vmatprep.subr.mxu0 0.0
    %2279 = vmatpush2.msra.mxu0 0.0
    %2280 = vmatprep.subr.mxu0 0.0
    %2281 = vmatpush2.msra.mxu0 0.0
    %2282 = vmatprep.subr.mxu0 0.0
    %2283 = vmatpush2.msra.mxu0 0.0
    %2284 = vmatprep.subr.mxu0 0.0
    %2285 = vmatpush2.msra.mxu0 0.0
    %2286 = vmatprep.subr.mxu0 0.0
    %2287 = vmatpush2.msra.mxu0 0.0
    %2288 = vmatprep.subr.mxu0 0.0
    %2289 = vmatpush2.msra.mxu0 0.0
    %2290 = vmatprep.subr.mxu0 0.0
    %2291 = vmatpush2.msra.mxu0 0.0
    %2292 = vmatprep.subr.mxu0 0.0
    %2293 = vmatpush2.msra.mxu0 0.0
    %2294 = vmatprep.subr.mxu0 0.0
    %2295 = vmatpush2.msra.mxu0 0.0
    %2296 = vmatprep.subr.mxu0 0.0
    %2297 = vmatpush2.msra.mxu0 0.0
    %2298 = vmatprep.mubr.f32.mxu0 0.0
    %2299 = vmatmul.mubr.f32.gmra.mxu0 %v2212
    %v2300 = vpop.f32.mrf.mxu0
    %v2301 = vadd.f32 %v2233, %v2300
    %v2302 = vpop.f32.mrf.mxu0
    %2303 = vmatprep.mubr.f32.mxu0 0.0
    %2304 = vmatmul.mubr.f32.gmra.mxu0 %v2213
    %v2305 = vpop.f32.mrf.mxu0
    %v2306 = vadd.f32 %v2233, %v2305
    %v2307 = vpop.f32.mrf.mxu0
    %2308 = vdwg.mxu0
    %v2309 = vadd.f32 %v2301, %v2075
    %v2310 = vadd.f32 %v2306, %v2076
    %2311 = vst.msk [vmem:[#allocation2] sm:$0xff] %vm21, %v2309
    %2312 = vst.msk [vmem:[#allocation2 + $0x8] sm:$0xff] %vm21, %v2310
    // Predicated region
    $region18: #{transformer_encoder.1} parent=1 // pred_check
      _
    $region19: #{transformer_encoder.1} parent=1 // pred_check_branch
      %2314 = sbr.rel (0) target = $region21
    $region20: #{transformer_encoder.1} parent=1 // pred_region
      %s2316 = ssub.s32 256, 256
      %2317 = vsyncadd [#allocation3], %s2316
      %s2318 = sshll.u32 [#allocation2], 4
      %s2319 = int_to_ptr.vmem [resolvable:$true] %s2318
      %2324 = dma.vmem_to_hbm [thread:$0]  %s2319, 256, %s4, [#allocation3], 128, 128, 8
    $region21: #{transformer_encoder.1} parent=1 // pred_fallthru
      _
    // Predicated region
    $region22: #{transformer_encoder.1} parent=1 // pred_check
      _
    $region23: #{transformer_encoder.1} parent=1 // pred_check_branch
      %2326 = sbr.rel (0) target = $region25
    $region24: #{transformer_encoder.1} parent=1 // pred_region
      %2327 = dma.done [#allocation3], 256
    $region25: #{transformer_encoder.1} parent=1 // pred_fallthru
      _
    %2328 = vsyncpa [#allocation3], 1

</llo_original>
